<compile_context>
chip_gen: v6e
topology: v6e:2x2x1
jax: 0.10.0
libtpu: 0.0.40
codegen_flags: <defaults>
</compile_context>

<pallas_src>
import numpy as np
import jax
import jax.numpy as jnp
from jax.experimental import pallas as pl
from jax.experimental.pallas import tpu as pltpu

H = 50        # LSTM hidden size (both lstm1 and lstm2)
GP = 128      # padded per-gate lane width: [lstm1(50) | lstm2(50) | pad(28)]
NG = 4 * GP   # 512 fused gate lanes, gate order [i, f, o, g]
BB = 8        # batch block (native sublane tile)
SIG_SCALE = 0.5  # sigmoid(x) = 0.5*tanh(0.5*x)+0.5; i/f/o pre-activations pre-scaled


# ----------------------------- kernel ---------------------------------------

def lstm_fused_kernel(xw_ref, whh_ref, x3pad_ref, w1h_ref, bfc1_ref,
                      w2_ref, bfc2_ref, out_ref):
    T = xw_ref.shape[0]
    Bb = xw_ref.shape[1]

    def step(t, carry):
        h, c = carry
        # gates: (Bb, 512) = precomputed (x_t*W_ih + b) + h @ W_hh_blockdiag.
        # whh_ref is read here (not hoisted) so the 64-vreg weight is streamed
        # from VMEM instead of pinned in the register file across the loop.
        gates = xw_ref[t] + jnp.dot(h, whh_ref[...],
                                    preferred_element_type=jnp.float32)
        # [i | f | o] sigmoid via tanh identity (pre-activations pre-scaled by 0.5).
        ifo = jnp.tanh(gates[:, 0:3 * GP]) * 0.5 + 0.5
        g = jnp.tanh(gates[:, 3 * GP:4 * GP])
        i = ifo[:, 0:GP]
        f = ifo[:, GP:2 * GP]
        o = ifo[:, 2 * GP:3 * GP]
        c_new = f * c + i * g
        h_new = o * jnp.tanh(c_new)
        return (h_new, c_new)

    h0 = jnp.zeros((Bb, GP), jnp.float32)
    c0 = jnp.zeros((Bb, GP), jnp.float32)

    # Manual 8x unroll (T = 120 divides evenly) so the scheduler sees a long
    # straight-line stretch of the serial recurrence per loop iteration.
    unroll = 8 if T % 8 == 0 else (4 if T % 4 == 0 else (2 if T % 2 == 0 else 1))

    def body(k, carry):
        t0 = pl.multiple_of(k * unroll, unroll)
        for u in range(unroll):
            carry = step(t0 + u, carry)
        return carry

    h, _ = jax.lax.fori_loop(0, T // unroll, body, (h0, c0))

    # Epilogue: x3 lives in the dead padding lanes 100:102 of h (which are
    # guaranteed zero), its fc1 weights live in rows 100:102 of w1h, so fc1 is
    # a single (Bb,128)@(128,50) matmul.
    hx = h + x3pad_ref[...]
    z = jnp.dot(hx, w1h_ref[...], preferred_element_type=jnp.float32) + bfc1_ref[...]
    z = jnp.maximum(z, 0.0)
    out_ref[...] = (jnp.dot(z, w2_ref[...], preferred_element_type=jnp.float32)
                    + bfc2_ref[...])


# ------------------------- weight / input fusion ----------------------------

def _fuse_gate_vec(v1, v2):
    """(4H,) vectors for lstm1/lstm2 (PyTorch order i,f,g,o) -> (NG,) fused
    layout: 4 gate groups [i, f, o, g], each 128 lanes = [lstm1 | lstm2 | 0].
    i/f/o groups are pre-scaled by SIG_SCALE for the tanh-based sigmoid."""
    pad = jnp.zeros((GP - 2 * H,), jnp.float32)

    def grp(a, b, s):
        return jnp.concatenate([a, b, pad]) * s

    return jnp.concatenate([
        grp(v1[0:H],         v2[0:H],         SIG_SCALE),  # i
        grp(v1[H:2 * H],     v2[H:2 * H],     SIG_SCALE),  # f
        grp(v1[3 * H:4 * H], v2[3 * H:4 * H], SIG_SCALE),  # o
        grp(v1[2 * H:3 * H], v2[2 * H:3 * H], 1.0),        # g
    ])


def _fuse_whh(w1t, w2t):
    """w_hh.T matrices (H, 4H) for lstm1/lstm2 -> fused block-diagonal (GP, NG),
    with the i/f/o blocks pre-scaled by SIG_SCALE."""
    def block(c1, c2, s):
        blk = jnp.zeros((GP, GP), jnp.float32)
        blk = blk.at[0:H, 0:H].set(c1 * s)
        blk = blk.at[H:2 * H, H:2 * H].set(c2 * s)
        return blk

    return jnp.concatenate([
        block(w1t[:, 0:H],         w2t[:, 0:H],         SIG_SCALE),  # i
        block(w1t[:, H:2 * H],     w2t[:, H:2 * H],     SIG_SCALE),  # f
        block(w1t[:, 3 * H:4 * H], w2t[:, 3 * H:4 * H], SIG_SCALE),  # o
        block(w1t[:, 2 * H:3 * H], w2t[:, 2 * H:3 * H], 1.0),        # g
    ], axis=1)


# ------------------------------ wrapper --------------------------------------

def lstm_model_forward(x, params):
    x = x.astype(jnp.float32)
    B = x.shape[0]

    # Slicing exactly as in the PyTorch forward.
    x3 = x[:, 0:2]          # (B, 2)
    x1 = x[:, 2:122]        # (B, 120)  -> lstm1 input (input_size = 1)
    x2 = x[:, 122:]         # (B, T2)   -> lstm2 input (input_size = 1)
    T = x1.shape[1]
    # Fused single-recurrence kernel assumes equal sequence lengths (120/120 here).
    assert x2.shape[1] == T, "fused LSTM kernel requires equal sequence lengths"

    # Pad batch to a multiple of the 8-row batch block.
    Bp = ((B + BB - 1) // BB) * BB
    pad_rows = Bp - B
    x1p = jnp.pad(x1, ((0, pad_rows), (0, 0)))
    x2p = jnp.pad(x2, ((0, pad_rows), (0, 0)))

    # LSTM params in the fused / padded / pre-scaled layout.
    wih1 = params["lstm1_w_ih"][:, 0]                               # (4H,)
    wih2 = params["lstm2_w_ih"][:, 0]
    b1 = params["lstm1_b_ih"] + params["lstm1_b_hh"]
    b2 = params["lstm2_b_ih"] + params["lstm2_b_hh"]
    zeros4h = jnp.zeros((4 * H,), jnp.float32)
    w1_lane = _fuse_gate_vec(wih1, zeros4h)                         # (NG,)
    w2_lane = _fuse_gate_vec(zeros4h, wih2)                         # (NG,)
    b_lane = _fuse_gate_vec(b1, b2)                                 # (NG,)

    # Precompute xw[t] = x1_t * W_ih1 + x2_t * W_ih2 + b for all t (time-major).
    # TODO(synk): for very large batch, tile this over T with a grid axis so
    # the per-block VMEM footprint stays bounded.
    x1_tm = x1p.T                                                   # (T, Bp)
    x2_tm = x2p.T
    xw = (x1_tm[:, :, None] * w1_lane[None, None, :]
          + x2_tm[:, :, None] * w2_lane[None, None, :]
          + b_lane[None, None, :]).astype(jnp.float32)              # (T, Bp, NG)

    whh = _fuse_whh(params["lstm1_w_hh"].T, params["lstm2_w_hh"].T)  # (GP, NG)

    # fc1: Linear(102, 50); rows 0:50 -> h1, 50:100 -> h2, 100:102 -> x3
    # (x3 weights parked in the dead padding lanes of h).
    w_fc1 = params["fc1_w"]                                         # (50, 102)
    w1h = jnp.zeros((GP, H), jnp.float32)
    w1h = w1h.at[0:H, :].set(w_fc1[:, 0:H].T)
    w1h = w1h.at[H:2 * H, :].set(w_fc1[:, H:2 * H].T)
    w1h = w1h.at[2 * H:2 * H + 2, :].set(w_fc1[:, 2 * H:].T)        # (GP, 50)
    bfc1 = params["fc1_b"][None, :]                                 # (1, 50)
    # fc2: Linear(50, 9)
    w2 = params["fc2_w"].T                                          # (50, 9)
    bfc2 = params["fc2_b"][None, :]                                 # (1, 9)

    # x3 placed into lanes 100:102 of a (Bp, GP) slab; everything else zero.
    x3pad = jnp.zeros((Bp, GP), jnp.float32)
    x3pad = x3pad.at[:B, 2 * H:2 * H + 2].set(x3)

    n_bblk = Bp // BB
    in_specs = [
        pl.BlockSpec((T, BB, NG), lambda b: (0, b, 0)),   # xw        (per batch block)
        pl.BlockSpec((GP, NG),    lambda b: (0, 0)),      # whh       (shared)
        pl.BlockSpec((BB, GP),    lambda b: (b, 0)),      # x3pad     (per batch block)
        pl.BlockSpec((GP, H),     lambda b: (0, 0)),      # w1h       (shared)
        pl.BlockSpec((1, H),      lambda b: (0, 0)),      # fc1 bias  (shared)
        pl.BlockSpec((H, 9),      lambda b: (0, 0)),      # w2        (shared)
        pl.BlockSpec((1, 9),      lambda b: (0, 0)),      # fc2 bias  (shared)
    ]

    out = pl.pallas_call(
        lstm_fused_kernel,
        out_shape=jax.ShapeDtypeStruct((Bp, 9), jnp.float32),
        grid=(n_bblk,),
        in_specs=in_specs,
        out_specs=pl.BlockSpec((BB, 9), lambda b: (b, 0)),
        compiler_params=pltpu.CompilerParams(
            dimension_semantics=("parallel",)),
    )(xw, whh, x3pad, w1h, bfc1, w2, bfc2)
    return out[:B]


# ------------------------------ reference ------------------------------------

def reference_forward(x, params):
    """Pure-JAX reference mirroring the PyTorch module for a correctness check."""
    x = x.astype(jnp.float32)
    x3 = x[:, 0:2]
    x1 = x[:, 2:122]
    x2 = x[:, 122:]
    hp = jax.lax.Precision.HIGHEST

    def lstm_last(x_seq, w_ih, w_hh, b_ih, b_hh):
        B = x_seq.shape[0]

        def step(carry, xt):
            h, c = carry
            gates = (xt[:, None] * w_ih[:, 0][None, :]
                     + jnp.dot(h, w_hh.T, precision=hp) + b_ih + b_hh)
            i = jax.nn.sigmoid(gates[:, 0:H])
            f = jax.nn.sigmoid(gates[:, H:2 * H])
            g = jnp.tanh(gates[:, 2 * H:3 * H])
            o = jax.nn.sigmoid(gates[:, 3 * H:4 * H])
            c = f * c + i * g
            h = o * jnp.tanh(c)
            return (h, c), None

        (h, _), _ = jax.lax.scan(
            step, (jnp.zeros((B, H), jnp.float32), jnp.zeros((B, H), jnp.float32)),
            x_seq.T)
        return h

    h1 = lstm_last(x1, params["lstm1_w_ih"], params["lstm1_w_hh"],
                   params["lstm1_b_ih"], params["lstm1_b_hh"])
    h2 = lstm_last(x2, params["lstm2_w_ih"], params["lstm2_w_hh"],
                   params["lstm2_b_ih"], params["lstm2_b_hh"])
    cat = jnp.concatenate([h1, h2, x3], axis=-1)
    z = jnp.maximum(jnp.dot(cat, params["fc1_w"].T, precision=hp) + params["fc1_b"], 0.0)
    return jnp.dot(z, params["fc2_w"].T, precision=hp) + params["fc2_b"]


def init_params(key):
    """Deterministic init with PyTorch-like uniform bounds (shapes from __init__)."""
    ks = jax.random.split(key, 12)
    kl = 1.0 / np.sqrt(H)       # LSTM(hidden=50)
    k1 = 1.0 / np.sqrt(102.0)   # Linear(102, 50)
    k2 = 1.0 / np.sqrt(50.0)    # Linear(50, 9)
    u = lambda k_, shape, b: jax.random.uniform(k_, shape, jnp.float32, -b, b)
    return {
        "lstm1_w_ih": u(ks[0], (4 * H, 1), kl),
        "lstm1_w_hh": u(ks[1], (4 * H, H), kl),
        "lstm1_b_ih": u(ks[2], (4 * H,), kl),
        "lstm1_b_hh": u(ks[3], (4 * H,), kl),
        "lstm2_w_ih": u(ks[4], (4 * H, 1), kl),
        "lstm2_w_hh": u(ks[5], (4 * H, H), kl),
        "lstm2_b_ih": u(ks[6], (4 * H,), kl),
        "lstm2_b_hh": u(ks[7], (4 * H,), kl),
        "fc1_w": u(ks[8], (50, 102), k1),
        "fc1_b": u(ks[9], (50,), k1),
        "fc2_w": u(ks[10], (9, 50), k2),
        "fc2_b": u(ks[11], (9,), k2),
    }


if __name__ == "__main__":
    key = jax.random.PRNGKey(0)
    pkey, xkey = jax.random.split(key)
    params = init_params(pkey)

    B, F = 4, 242  # x[:, 2:122] -> seq 120 for lstm1; x[:, 122:] -> seq 120 for lstm2
    x = jax.random.normal(xkey, (B, F), jnp.float32)

    out = jax.jit(lambda xx: lstm_model_forward(xx, params))(x)
    out = jax.block_until_ready(out)

    ref = reference_forward(x, params)
    assert out.shape == (B, 9), out.shape
    err = float(jnp.max(jnp.abs(out - ref)))
    assert err < 2e-2, f"max abs error vs reference: {err}"
    print("KERNEL_OK")
</pallas_src>

<mosaic_0001>
module attributes {stable_mosaic.version = 11 : i64} {
  func.func @lstm_fused_kernel(%arg0: i32, %arg1: memref<120x8x512xf32, #tpu.memory_space<vmem>>, %arg2: memref<128x512xf32, #tpu.memory_space<vmem>>, %arg3: memref<8x128xf32, #tpu.memory_space<vmem>>, %arg4: memref<128x50xf32, #tpu.memory_space<vmem>>, %arg5: memref<1x50xf32, #tpu.memory_space<vmem>>, %arg6: memref<50x9xf32, #tpu.memory_space<vmem>>, %arg7: memref<1x9xf32, #tpu.memory_space<vmem>>, %arg8: memref<8x9xf32, #tpu.memory_space<vmem>>) attributes {dimension_semantics = [#tpu.dimension_semantics<parallel>], iteration_bounds = array<i64: 1>, scalar_prefetch = 0 : i64, scratch_operands = 0 : i64, tpu.core_type = #tpu.core_type<tc>, window_params = [{transform_indices = @transform_0, window_bounds = array<i64: 120, 8, 512>}, {pipeline_mode = #tpu.pipeline_mode<synchronous>, transform_indices = @transform_1, window_bounds = array<i64: 128, 512>}, {transform_indices = @transform_2, window_bounds = array<i64: 8, 128>}, {pipeline_mode = #tpu.pipeline_mode<synchronous>, transform_indices = @transform_3, window_bounds = array<i64: 128, 50>}, {pipeline_mode = #tpu.pipeline_mode<synchronous>, transform_indices = @transform_4, window_bounds = array<i64: 1, 50>}, {pipeline_mode = #tpu.pipeline_mode<synchronous>, transform_indices = @transform_5, window_bounds = array<i64: 50, 9>}, {pipeline_mode = #tpu.pipeline_mode<synchronous>, transform_indices = @transform_6, window_bounds = array<i64: 1, 9>}, {transform_indices = @transform_7, window_bounds = array<i64: 8, 9>}]} {
    %cst = arith.constant 0.000000e+00 : f32
    %0 = vector.broadcast %cst : f32 to vector<8x128xf32>
    %cst_0 = arith.constant 0.000000e+00 : f32
    %1 = vector.broadcast %cst_0 : f32 to vector<8x128xf32>
    %c0_i32 = arith.constant 0 : i32
    %c15_i32 = arith.constant 15 : i32
    %2 = arith.addi %c0_i32, %c15_i32 : i32
    %c1_i32 = arith.constant 1 : i32
    %3:2 = scf.for %arg9 = %c0_i32 to %2 step %c1_i32 iter_args(%arg10 = %0, %arg11 = %1) -> (vector<8x128xf32>, vector<8x128xf32>)  : i32 {
      %c8_i32 = arith.constant 8 : i32
      %19 = arith.muli %arg9, %c8_i32 : i32
      %20 = tpu.assume_multiple %19, 8 : i32
      %c0_i32_16 = arith.constant 0 : i32
      %21 = arith.addi %20, %c0_i32_16 : i32
      %22 = arith.index_cast %21 : i32 to index
      %c0_17 = arith.constant 0 : index
      %c0_18 = arith.constant 0 : index
      %23 = vector.load %arg1[%22, %c0_17, %c0_18] : memref<120x8x512xf32, #tpu.memory_space<vmem>>, vector<1x8x512xf32>
      %24 = vector.shape_cast %23 : vector<1x8x512xf32> to vector<8x512xf32>
      %c0_19 = arith.constant 0 : index
      %c0_20 = arith.constant 0 : index
      %25 = vector.load %arg2[%c0_19, %c0_20] : memref<128x512xf32, #tpu.memory_space<vmem>>, vector<128x512xf32>
      %cst_21 = arith.constant dense<0.000000e+00> : vector<8x512xf32>
      %26 = tpu.matmul %arg10, %25, %cst_21 {dimension_numbers = #tpu.dot_dimension_numbers<[1], [0], [0], [1], [0, 0, 1, 1], [], []>} : vector<8x128xf32>, vector<128x512xf32>, vector<8x512xf32> -> vector<8x512xf32>
      %27 = arith.addf %24, %26 : vector<8x512xf32>
      %28 = vector.extract_strided_slice %27 {offsets = [0, 0], sizes = [8, 384], strides = [1, 1]} : vector<8x512xf32> to vector<8x384xf32>
      %29 = math.tanh %28 : vector<8x384xf32>
      %cst_22 = arith.constant 5.000000e-01 : f32
      %30 = vector.broadcast %cst_22 : f32 to vector<8x384xf32>
      %31 = arith.mulf %29, %30 : vector<8x384xf32>
      %cst_23 = arith.constant 5.000000e-01 : f32
      %32 = vector.broadcast %cst_23 : f32 to vector<8x384xf32>
      %33 = arith.addf %31, %32 : vector<8x384xf32>
      %34 = vector.extract_strided_slice %27 {offsets = [0, 384], sizes = [8, 128], strides = [1, 1]} : vector<8x512xf32> to vector<8x128xf32>
      %35 = math.tanh %34 : vector<8x128xf32>
      %36 = vector.extract_strided_slice %33 {offsets = [0, 0], sizes = [8, 128], strides = [1, 1]} : vector<8x384xf32> to vector<8x128xf32>
      %37 = vector.extract_strided_slice %33 {offsets = [0, 128], sizes = [8, 128], strides = [1, 1]} : vector<8x384xf32> to vector<8x128xf32>
      %38 = vector.extract_strided_slice %33 {offsets = [0, 256], sizes = [8, 128], strides = [1, 1]} : vector<8x384xf32> to vector<8x128xf32>
      %39 = arith.mulf %37, %arg11 : vector<8x128xf32>
      %40 = arith.mulf %36, %35 : vector<8x128xf32>
      %41 = arith.addf %39, %40 : vector<8x128xf32>
      %42 = math.tanh %41 : vector<8x128xf32>
      %43 = arith.mulf %38, %42 : vector<8x128xf32>
      %c1_i32_24 = arith.constant 1 : i32
      %44 = arith.addi %20, %c1_i32_24 : i32
      %45 = arith.index_cast %44 : i32 to index
      %c0_25 = arith.constant 0 : index
      %c0_26 = arith.constant 0 : index
      %46 = vector.load %arg1[%45, %c0_25, %c0_26] : memref<120x8x512xf32, #tpu.memory_space<vmem>>, vector<1x8x512xf32>
      %47 = vector.shape_cast %46 : vector<1x8x512xf32> to vector<8x512xf32>
      %c0_27 = arith.constant 0 : index
      %c0_28 = arith.constant 0 : index
      %48 = vector.load %arg2[%c0_27, %c0_28] : memref<128x512xf32, #tpu.memory_space<vmem>>, vector<128x512xf32>
      %cst_29 = arith.constant dense<0.000000e+00> : vector<8x512xf32>
      %49 = tpu.matmul %43, %48, %cst_29 {dimension_numbers = #tpu.dot_dimension_numbers<[1], [0], [0], [1], [0, 0, 1, 1], [], []>} : vector<8x128xf32>, vector<128x512xf32>, vector<8x512xf32> -> vector<8x512xf32>
      %50 = arith.addf %47, %49 : vector<8x512xf32>
      %51 = vector.extract_strided_slice %50 {offsets = [0, 0], sizes = [8, 384], strides = [1, 1]} : vector<8x512xf32> to vector<8x384xf32>
      %52 = math.tanh %51 : vector<8x384xf32>
      %cst_30 = arith.constant 5.000000e-01 : f32
      %53 = vector.broadcast %cst_30 : f32 to vector<8x384xf32>
      %54 = arith.mulf %52, %53 : vector<8x384xf32>
      %cst_31 = arith.constant 5.000000e-01 : f32
      %55 = vector.broadcast %cst_31 : f32 to vector<8x384xf32>
      %56 = arith.addf %54, %55 : vector<8x384xf32>
      %57 = vector.extract_strided_slice %50 {offsets = [0, 384], sizes = [8, 128], strides = [1, 1]} : vector<8x512xf32> to vector<8x128xf32>
      %58 = math.tanh %57 : vector<8x128xf32>
      %59 = vector.extract_strided_slice %56 {offsets = [0, 0], sizes = [8, 128], strides = [1, 1]} : vector<8x384xf32> to vector<8x128xf32>
      %60 = vector.extract_strided_slice %56 {offsets = [0, 128], sizes = [8, 128], strides = [1, 1]} : vector<8x384xf32> to vector<8x128xf32>
      %61 = vector.extract_strided_slice %56 {offsets = [0, 256], sizes = [8, 128], strides = [1, 1]} : vector<8x384xf32> to vector<8x128xf32>
      %62 = arith.mulf %60, %41 : vector<8x128xf32>
      %63 = arith.mulf %59, %58 : vector<8x128xf32>
      %64 = arith.addf %62, %63 : vector<8x128xf32>
      %65 = math.tanh %64 : vector<8x128xf32>
      %66 = arith.mulf %61, %65 : vector<8x128xf32>
      %c2_i32 = arith.constant 2 : i32
      %67 = arith.addi %20, %c2_i32 : i32
      %68 = arith.index_cast %67 : i32 to index
      %c0_32 = arith.constant 0 : index
      %c0_33 = arith.constant 0 : index
      %69 = vector.load %arg1[%68, %c0_32, %c0_33] : memref<120x8x512xf32, #tpu.memory_space<vmem>>, vector<1x8x512xf32>
      %70 = vector.shape_cast %69 : vector<1x8x512xf32> to vector<8x512xf32>
      %c0_34 = arith.constant 0 : index
      %c0_35 = arith.constant 0 : index
      %71 = vector.load %arg2[%c0_34, %c0_35] : memref<128x512xf32, #tpu.memory_space<vmem>>, vector<128x512xf32>
      %cst_36 = arith.constant dense<0.000000e+00> : vector<8x512xf32>
      %72 = tpu.matmul %66, %71, %cst_36 {dimension_numbers = #tpu.dot_dimension_numbers<[1], [0], [0], [1], [0, 0, 1, 1], [], []>} : vector<8x128xf32>, vector<128x512xf32>, vector<8x512xf32> -> vector<8x512xf32>
      %73 = arith.addf %70, %72 : vector<8x512xf32>
      %74 = vector.extract_strided_slice %73 {offsets = [0, 0], sizes = [8, 384], strides = [1, 1]} : vector<8x512xf32> to vector<8x384xf32>
      %75 = math.tanh %74 : vector<8x384xf32>
      %cst_37 = arith.constant 5.000000e-01 : f32
      %76 = vector.broadcast %cst_37 : f32 to vector<8x384xf32>
      %77 = arith.mulf %75, %76 : vector<8x384xf32>
      %cst_38 = arith.constant 5.000000e-01 : f32
      %78 = vector.broadcast %cst_38 : f32 to vector<8x384xf32>
      %79 = arith.addf %77, %78 : vector<8x384xf32>
      %80 = vector.extract_strided_slice %73 {offsets = [0, 384], sizes = [8, 128], strides = [1, 1]} : vector<8x512xf32> to vector<8x128xf32>
      %81 = math.tanh %80 : vector<8x128xf32>
      %82 = vector.extract_strided_slice %79 {offsets = [0, 0], sizes = [8, 128], strides = [1, 1]} : vector<8x384xf32> to vector<8x128xf32>
      %83 = vector.extract_strided_slice %79 {offsets = [0, 128], sizes = [8, 128], strides = [1, 1]} : vector<8x384xf32> to vector<8x128xf32>
      %84 = vector.extract_strided_slice %79 {offsets = [0, 256], sizes = [8, 128], strides = [1, 1]} : vector<8x384xf32> to vector<8x128xf32>
      %85 = arith.mulf %83, %64 : vector<8x128xf32>
      %86 = arith.mulf %82, %81 : vector<8x128xf32>
      %87 = arith.addf %85, %86 : vector<8x128xf32>
      %88 = math.tanh %87 : vector<8x128xf32>
      %89 = arith.mulf %84, %88 : vector<8x128xf32>
      %c3_i32 = arith.constant 3 : i32
      %90 = arith.addi %20, %c3_i32 : i32
      %91 = arith.index_cast %90 : i32 to index
      %c0_39 = arith.constant 0 : index
      %c0_40 = arith.constant 0 : index
      %92 = vector.load %arg1[%91, %c0_39, %c0_40] : memref<120x8x512xf32, #tpu.memory_space<vmem>>, vector<1x8x512xf32>
      %93 = vector.shape_cast %92 : vector<1x8x512xf32> to vector<8x512xf32>
      %c0_41 = arith.constant 0 : index
      %c0_42 = arith.constant 0 : index
      %94 = vector.load %arg2[%c0_41, %c0_42] : memref<128x512xf32, #tpu.memory_space<vmem>>, vector<128x512xf32>
      %cst_43 = arith.constant dense<0.000000e+00> : vector<8x512xf32>
      %95 = tpu.matmul %89, %94, %cst_43 {dimension_numbers = #tpu.dot_dimension_numbers<[1], [0], [0], [1], [0, 0, 1, 1], [], []>} : vector<8x128xf32>, vector<128x512xf32>, vector<8x512xf32> -> vector<8x512xf32>
      %96 = arith.addf %93, %95 : vector<8x512xf32>
      %97 = vector.extract_strided_slice %96 {offsets = [0, 0], sizes = [8, 384], strides = [1, 1]} : vector<8x512xf32> to vector<8x384xf32>
      %98 = math.tanh %97 : vector<8x384xf32>
      %cst_44 = arith.constant 5.000000e-01 : f32
      %99 = vector.broadcast %cst_44 : f32 to vector<8x384xf32>
      %100 = arith.mulf %98, %99 : vector<8x384xf32>
      %cst_45 = arith.constant 5.000000e-01 : f32
      %101 = vector.broadcast %cst_45 : f32 to vector<8x384xf32>
      %102 = arith.addf %100, %101 : vector<8x384xf32>
      %103 = vector.extract_strided_slice %96 {offsets = [0, 384], sizes = [8, 128], strides = [1, 1]} : vector<8x512xf32> to vector<8x128xf32>
      %104 = math.tanh %103 : vector<8x128xf32>
      %105 = vector.extract_strided_slice %102 {offsets = [0, 0], sizes = [8, 128], strides = [1, 1]} : vector<8x384xf32> to vector<8x128xf32>
      %106 = vector.extract_strided_slice %102 {offsets = [0, 128], sizes = [8, 128], strides = [1, 1]} : vector<8x384xf32> to vector<8x128xf32>
      %107 = vector.extract_strided_slice %102 {offsets = [0, 256], sizes = [8, 128], strides = [1, 1]} : vector<8x384xf32> to vector<8x128xf32>
      %108 = arith.mulf %106, %87 : vector<8x128xf32>
      %109 = arith.mulf %105, %104 : vector<8x128xf32>
      %110 = arith.addf %108, %109 : vector<8x128xf32>
      %111 = math.tanh %110 : vector<8x128xf32>
      %112 = arith.mulf %107, %111 : vector<8x128xf32>
      %c4_i32 = arith.constant 4 : i32
      %113 = arith.addi %20, %c4_i32 : i32
      %114 = arith.index_cast %113 : i32 to index
      %c0_46 = arith.constant 0 : index
      %c0_47 = arith.constant 0 : index
      %115 = vector.load %arg1[%114, %c0_46, %c0_47] : memref<120x8x512xf32, #tpu.memory_space<vmem>>, vector<1x8x512xf32>
      %116 = vector.shape_cast %115 : vector<1x8x512xf32> to vector<8x512xf32>
      %c0_48 = arith.constant 0 : index
      %c0_49 = arith.constant 0 : index
      %117 = vector.load %arg2[%c0_48, %c0_49] : memref<128x512xf32, #tpu.memory_space<vmem>>, vector<128x512xf32>
      %cst_50 = arith.constant dense<0.000000e+00> : vector<8x512xf32>
      %118 = tpu.matmul %112, %117, %cst_50 {dimension_numbers = #tpu.dot_dimension_numbers<[1], [0], [0], [1], [0, 0, 1, 1], [], []>} : vector<8x128xf32>, vector<128x512xf32>, vector<8x512xf32> -> vector<8x512xf32>
      %119 = arith.addf %116, %118 : vector<8x512xf32>
      %120 = vector.extract_strided_slice %119 {offsets = [0, 0], sizes = [8, 384], strides = [1, 1]} : vector<8x512xf32> to vector<8x384xf32>
      %121 = math.tanh %120 : vector<8x384xf32>
      %cst_51 = arith.constant 5.000000e-01 : f32
      %122 = vector.broadcast %cst_51 : f32 to vector<8x384xf32>
      %123 = arith.mulf %121, %122 : vector<8x384xf32>
      %cst_52 = arith.constant 5.000000e-01 : f32
      %124 = vector.broadcast %cst_52 : f32 to vector<8x384xf32>
      %125 = arith.addf %123, %124 : vector<8x384xf32>
      %126 = vector.extract_strided_slice %119 {offsets = [0, 384], sizes = [8, 128], strides = [1, 1]} : vector<8x512xf32> to vector<8x128xf32>
      %127 = math.tanh %126 : vector<8x128xf32>
      %128 = vector.extract_strided_slice %125 {offsets = [0, 0], sizes = [8, 128], strides = [1, 1]} : vector<8x384xf32> to vector<8x128xf32>
      %129 = vector.extract_strided_slice %125 {offsets = [0, 128], sizes = [8, 128], strides = [1, 1]} : vector<8x384xf32> to vector<8x128xf32>
      %130 = vector.extract_strided_slice %125 {offsets = [0, 256], sizes = [8, 128], strides = [1, 1]} : vector<8x384xf32> to vector<8x128xf32>
      %131 = arith.mulf %129, %110 : vector<8x128xf32>
      %132 = arith.mulf %128, %127 : vector<8x128xf32>
      %133 = arith.addf %131, %132 : vector<8x128xf32>
      %134 = math.tanh %133 : vector<8x128xf32>
      %135 = arith.mulf %130, %134 : vector<8x128xf32>
      %c5_i32 = arith.constant 5 : i32
      %136 = arith.addi %20, %c5_i32 : i32
      %137 = arith.index_cast %136 : i32 to index
      %c0_53 = arith.constant 0 : index
      %c0_54 = arith.constant 0 : index
      %138 = vector.load %arg1[%137, %c0_53, %c0_54] : memref<120x8x512xf32, #tpu.memory_space<vmem>>, vector<1x8x512xf32>
      %139 = vector.shape_cast %138 : vector<1x8x512xf32> to vector<8x512xf32>
      %c0_55 = arith.constant 0 : index
      %c0_56 = arith.constant 0 : index
      %140 = vector.load %arg2[%c0_55, %c0_56] : memref<128x512xf32, #tpu.memory_space<vmem>>, vector<128x512xf32>
      %cst_57 = arith.constant dense<0.000000e+00> : vector<8x512xf32>
      %141 = tpu.matmul %135, %140, %cst_57 {dimension_numbers = #tpu.dot_dimension_numbers<[1], [0], [0], [1], [0, 0, 1, 1], [], []>} : vector<8x128xf32>, vector<128x512xf32>, vector<8x512xf32> -> vector<8x512xf32>
      %142 = arith.addf %139, %141 : vector<8x512xf32>
      %143 = vector.extract_strided_slice %142 {offsets = [0, 0], sizes = [8, 384], strides = [1, 1]} : vector<8x512xf32> to vector<8x384xf32>
      %144 = math.tanh %143 : vector<8x384xf32>
      %cst_58 = arith.constant 5.000000e-01 : f32
      %145 = vector.broadcast %cst_58 : f32 to vector<8x384xf32>
      %146 = arith.mulf %144, %145 : vector<8x384xf32>
      %cst_59 = arith.constant 5.000000e-01 : f32
      %147 = vector.broadcast %cst_59 : f32 to vector<8x384xf32>
      %148 = arith.addf %146, %147 : vector<8x384xf32>
      %149 = vector.extract_strided_slice %142 {offsets = [0, 384], sizes = [8, 128], strides = [1, 1]} : vector<8x512xf32> to vector<8x128xf32>
      %150 = math.tanh %149 : vector<8x128xf32>
      %151 = vector.extract_strided_slice %148 {offsets = [0, 0], sizes = [8, 128], strides = [1, 1]} : vector<8x384xf32> to vector<8x128xf32>
      %152 = vector.extract_strided_slice %148 {offsets = [0, 128], sizes = [8, 128], strides = [1, 1]} : vector<8x384xf32> to vector<8x128xf32>
      %153 = vector.extract_strided_slice %148 {offsets = [0, 256], sizes = [8, 128], strides = [1, 1]} : vector<8x384xf32> to vector<8x128xf32>
      %154 = arith.mulf %152, %133 : vector<8x128xf32>
      %155 = arith.mulf %151, %150 : vector<8x128xf32>
      %156 = arith.addf %154, %155 : vector<8x128xf32>
      %157 = math.tanh %156 : vector<8x128xf32>
      %158 = arith.mulf %153, %157 : vector<8x128xf32>
      %c6_i32 = arith.constant 6 : i32
      %159 = arith.addi %20, %c6_i32 : i32
      %160 = arith.index_cast %159 : i32 to index
      %c0_60 = arith.constant 0 : index
      %c0_61 = arith.constant 0 : index
      %161 = vector.load %arg1[%160, %c0_60, %c0_61] : memref<120x8x512xf32, #tpu.memory_space<vmem>>, vector<1x8x512xf32>
      %162 = vector.shape_cast %161 : vector<1x8x512xf32> to vector<8x512xf32>
      %c0_62 = arith.constant 0 : index
      %c0_63 = arith.constant 0 : index
      %163 = vector.load %arg2[%c0_62, %c0_63] : memref<128x512xf32, #tpu.memory_space<vmem>>, vector<128x512xf32>
      %cst_64 = arith.constant dense<0.000000e+00> : vector<8x512xf32>
      %164 = tpu.matmul %158, %163, %cst_64 {dimension_numbers = #tpu.dot_dimension_numbers<[1], [0], [0], [1], [0, 0, 1, 1], [], []>} : vector<8x128xf32>, vector<128x512xf32>, vector<8x512xf32> -> vector<8x512xf32>
      %165 = arith.addf %162, %164 : vector<8x512xf32>
      %166 = vector.extract_strided_slice %165 {offsets = [0, 0], sizes = [8, 384], strides = [1, 1]} : vector<8x512xf32> to vector<8x384xf32>
      %167 = math.tanh %166 : vector<8x384xf32>
      %cst_65 = arith.constant 5.000000e-01 : f32
      %168 = vector.broadcast %cst_65 : f32 to vector<8x384xf32>
      %169 = arith.mulf %167, %168 : vector<8x384xf32>
      %cst_66 = arith.constant 5.000000e-01 : f32
      %170 = vector.broadcast %cst_66 : f32 to vector<8x384xf32>
      %171 = arith.addf %169, %170 : vector<8x384xf32>
      %172 = vector.extract_strided_slice %165 {offsets = [0, 384], sizes = [8, 128], strides = [1, 1]} : vector<8x512xf32> to vector<8x128xf32>
      %173 = math.tanh %172 : vector<8x128xf32>
      %174 = vector.extract_strided_slice %171 {offsets = [0, 0], sizes = [8, 128], strides = [1, 1]} : vector<8x384xf32> to vector<8x128xf32>
      %175 = vector.extract_strided_slice %171 {offsets = [0, 128], sizes = [8, 128], strides = [1, 1]} : vector<8x384xf32> to vector<8x128xf32>
      %176 = vector.extract_strided_slice %171 {offsets = [0, 256], sizes = [8, 128], strides = [1, 1]} : vector<8x384xf32> to vector<8x128xf32>
      %177 = arith.mulf %175, %156 : vector<8x128xf32>
      %178 = arith.mulf %174, %173 : vector<8x128xf32>
      %179 = arith.addf %177, %178 : vector<8x128xf32>
      %180 = math.tanh %179 : vector<8x128xf32>
      %181 = arith.mulf %176, %180 : vector<8x128xf32>
      %c7_i32 = arith.constant 7 : i32
      %182 = arith.addi %20, %c7_i32 : i32
      %183 = arith.index_cast %182 : i32 to index
      %c0_67 = arith.constant 0 : index
      %c0_68 = arith.constant 0 : index
      %184 = vector.load %arg1[%183, %c0_67, %c0_68] : memref<120x8x512xf32, #tpu.memory_space<vmem>>, vector<1x8x512xf32>
      %185 = vector.shape_cast %184 : vector<1x8x512xf32> to vector<8x512xf32>
      %c0_69 = arith.constant 0 : index
      %c0_70 = arith.constant 0 : index
      %186 = vector.load %arg2[%c0_69, %c0_70] : memref<128x512xf32, #tpu.memory_space<vmem>>, vector<128x512xf32>
      %cst_71 = arith.constant dense<0.000000e+00> : vector<8x512xf32>
      %187 = tpu.matmul %181, %186, %cst_71 {dimension_numbers = #tpu.dot_dimension_numbers<[1], [0], [0], [1], [0, 0, 1, 1], [], []>} : vector<8x128xf32>, vector<128x512xf32>, vector<8x512xf32> -> vector<8x512xf32>
      %188 = arith.addf %185, %187 : vector<8x512xf32>
      %189 = vector.extract_strided_slice %188 {offsets = [0, 0], sizes = [8, 384], strides = [1, 1]} : vector<8x512xf32> to vector<8x384xf32>
      %190 = math.tanh %189 : vector<8x384xf32>
      %cst_72 = arith.constant 5.000000e-01 : f32
      %191 = vector.broadcast %cst_72 : f32 to vector<8x384xf32>
      %192 = arith.mulf %190, %191 : vector<8x384xf32>
      %cst_73 = arith.constant 5.000000e-01 : f32
      %193 = vector.broadcast %cst_73 : f32 to vector<8x384xf32>
      %194 = arith.addf %192, %193 : vector<8x384xf32>
      %195 = vector.extract_strided_slice %188 {offsets = [0, 384], sizes = [8, 128], strides = [1, 1]} : vector<8x512xf32> to vector<8x128xf32>
      %196 = math.tanh %195 : vector<8x128xf32>
      %197 = vector.extract_strided_slice %194 {offsets = [0, 0], sizes = [8, 128], strides = [1, 1]} : vector<8x384xf32> to vector<8x128xf32>
      %198 = vector.extract_strided_slice %194 {offsets = [0, 128], sizes = [8, 128], strides = [1, 1]} : vector<8x384xf32> to vector<8x128xf32>
      %199 = vector.extract_strided_slice %194 {offsets = [0, 256], sizes = [8, 128], strides = [1, 1]} : vector<8x384xf32> to vector<8x128xf32>
      %200 = arith.mulf %198, %179 : vector<8x128xf32>
      %201 = arith.mulf %197, %196 : vector<8x128xf32>
      %202 = arith.addf %200, %201 : vector<8x128xf32>
      %203 = math.tanh %202 : vector<8x128xf32>
      %204 = arith.mulf %199, %203 : vector<8x128xf32>
      scf.yield %204, %202 : vector<8x128xf32>, vector<8x128xf32>
    }
    %c15_i32_1 = arith.constant 15 : i32
    %c0 = arith.constant 0 : index
    %c0_2 = arith.constant 0 : index
    %4 = vector.load %arg3[%c0, %c0_2] : memref<8x128xf32, #tpu.memory_space<vmem>>, vector<8x128xf32>
    %5 = arith.addf %3#0, %4 : vector<8x128xf32>
    %c0_3 = arith.constant 0 : index
    %c0_4 = arith.constant 0 : index
    %6 = vector.load %arg4[%c0_3, %c0_4] : memref<128x50xf32, #tpu.memory_space<vmem>>, vector<128x50xf32>
    %cst_5 = arith.constant dense<0.000000e+00> : vector<8x50xf32>
    %7 = tpu.matmul %5, %6, %cst_5 {dimension_numbers = #tpu.dot_dimension_numbers<[1], [0], [0], [1], [0, 0, 1, 1], [], []>} : vector<8x128xf32>, vector<128x50xf32>, vector<8x50xf32> -> vector<8x50xf32>
    %c0_6 = arith.constant 0 : index
    %c0_7 = arith.constant 0 : index
    %8 = vector.load %arg5[%c0_6, %c0_7] : memref<1x50xf32, #tpu.memory_space<vmem>>, vector<1x50xf32>
    %9 = vector.broadcast %8 : vector<1x50xf32> to vector<8x50xf32>
    %10 = arith.addf %7, %9 : vector<8x50xf32>
    %cst_8 = arith.constant 0.000000e+00 : f32
    %11 = vector.broadcast %cst_8 : f32 to vector<8x50xf32>
    %12 = arith.maximumf %10, %11 : vector<8x50xf32>
    %c0_9 = arith.constant 0 : index
    %c0_10 = arith.constant 0 : index
    %13 = vector.load %arg6[%c0_9, %c0_10] : memref<50x9xf32, #tpu.memory_space<vmem>>, vector<50x9xf32>
    %cst_11 = arith.constant dense<0.000000e+00> : vector<8x9xf32>
    %14 = tpu.matmul %12, %13, %cst_11 {dimension_numbers = #tpu.dot_dimension_numbers<[1], [0], [0], [1], [0, 0, 1, 1], [], []>} : vector<8x50xf32>, vector<50x9xf32>, vector<8x9xf32> -> vector<8x9xf32>
    %c0_12 = arith.constant 0 : index
    %c0_13 = arith.constant 0 : index
    %15 = vector.load %arg7[%c0_12, %c0_13] : memref<1x9xf32, #tpu.memory_space<vmem>>, vector<1x9xf32>
    %16 = vector.broadcast %15 : vector<1x9xf32> to vector<8x9xf32>
    %17 = arith.addf %14, %16 : vector<8x9xf32>
    %c0_14 = arith.constant 0 : index
    %c0_15 = arith.constant 0 : index
    %18 = vector.load %arg8[%c0_14, %c0_15] : memref<8x9xf32, #tpu.memory_space<vmem>>, vector<8x9xf32>
    tpu.vector_store %arg8[%c0_14, %c0_15], %17 {strides = array<i32>} : memref<8x9xf32, #tpu.memory_space<vmem>>, vector<8x9xf32>,
    return
  }
  func.func @transform_0(%arg0: i32) -> (i32, i32, i32) {
    %c0_i32 = arith.constant 0 : i32
    %c0_i32_0 = arith.constant 0 : i32
    %c0_i32_1 = arith.constant 0 : i32
    return %c0_i32, %arg0, %c0_i32_0 : i32, i32, i32
  }
  func.func @transform_1(%arg0: i32) -> (i32, i32) {
    %c0_i32 = arith.constant 0 : i32
    %c0_i32_0 = arith.constant 0 : i32
    %c0_i32_1 = arith.constant 0 : i32
    return %c0_i32, %c0_i32_0 : i32, i32
  }
  func.func @transform_2(%arg0: i32) -> (i32, i32) {
    %c0_i32 = arith.constant 0 : i32
    %c0_i32_0 = arith.constant 0 : i32
    return %arg0, %c0_i32 : i32, i32
  }
  func.func @transform_3(%arg0: i32) -> (i32, i32) {
    %c0_i32 = arith.constant 0 : i32
    %c0_i32_0 = arith.constant 0 : i32
    %c0_i32_1 = arith.constant 0 : i32
    return %c0_i32, %c0_i32_0 : i32, i32
  }
  func.func @transform_4(%arg0: i32) -> (i32, i32) {
    %c0_i32 = arith.constant 0 : i32
    %c0_i32_0 = arith.constant 0 : i32
    %c0_i32_1 = arith.constant 0 : i32
    return %c0_i32, %c0_i32_0 : i32, i32
  }
  func.func @transform_5(%arg0: i32) -> (i32, i32) {
    %c0_i32 = arith.constant 0 : i32
    %c0_i32_0 = arith.constant 0 : i32
    %c0_i32_1 = arith.constant 0 : i32
    return %c0_i32, %c0_i32_0 : i32, i32
  }
  func.func @transform_6(%arg0: i32) -> (i32, i32) {
    %c0_i32 = arith.constant 0 : i32
    %c0_i32_0 = arith.constant 0 : i32
    %c0_i32_1 = arith.constant 0 : i32
    return %c0_i32, %c0_i32_0 : i32, i32
  }
  func.func @transform_7(%arg0: i32) -> (i32, i32) {
    %c0_i32 = arith.constant 0 : i32
    %c0_i32_0 = arith.constant 0 : i32
    return %arg0, %c0_i32 : i32, i32
  }
}

</mosaic_0001>

<llo_original>
// kernel: _lambda_.1
$region0: #{_lambda_.1}
  #allocation0 [shape = 'u32[]', space=smem, size = 0x4, offset = 0x4, fixed_abs, tag = 'smem constant byte address 0x4 - core index']
  #allocation1 [shape = 'u32[144,128]{1,0:T(1,128)}', space=vmem, size = 0x12000, scoped, tag = 'internal scratch']
  %s0 = inlined_call_operand.vmem [shape: f32[120,8,512], index: 0, kind: input, shape index: {}]
  %s1 = inlined_call_operand.vmem [shape: f32[128,512], index: 1, kind: input, shape index: {}]
  %s2 = inlined_call_operand.vmem [shape: f32[8,128], index: 2, kind: input, shape index: {}]
  %s3 = inlined_call_operand.vmem [shape: f32[128,50], index: 3, kind: input, shape index: {}]
  %s4 = inlined_call_operand.vmem [shape: f32[1,50], index: 4, kind: input, shape index: {}]
  %s5 = inlined_call_operand.vmem [shape: f32[50,9], index: 5, kind: input, shape index: {}]
  %s6 = inlined_call_operand.vmem [shape: f32[1,9], index: 6, kind: input, shape index: {}]
  %s7 = inlined_call_operand.vmem [shape: f32[8,9], index: 7, kind: output, shape index: {}]
  %s8 = sld [smem:[#allocation0]]
  $region45: #{_lambda_.1} parent=0
    _
  %s10 = ssub.s32 1, %s8
  %s11 = scalar_select 0, %s10, %s8
  // Predicated region
  $region2: #{_lambda_.1} parent=0 // pred_check
    _
  $region3: #{_lambda_.1} parent=0 // pred_check_branch
    %13 = sbr.rel (0) target = $region5
  $region4: #{_lambda_.1} parent=0 // pred_region
    _
  $region5: #{_lambda_.1} parent=0 // pred_fallthru
    _
  // Predicated region
  $region6: #{_lambda_.1} parent=0 // pred_check
    _
  $region7: #{_lambda_.1} parent=0 // pred_check_branch
    %15 = sbr.rel (0) target = $region9
  $region8: #{_lambda_.1} parent=0 // pred_region
    _
  $region9: #{_lambda_.1} parent=0 // pred_fallthru
    _
  // Predicated region
  $region10: #{_lambda_.1} parent=0 // pred_check
    _
  $region11: #{_lambda_.1} parent=0 // pred_check_branch
    %17 = sbr.rel (0) target = $region13
  $region12: #{_lambda_.1} parent=0 // pred_region
    _
  $region13: #{_lambda_.1} parent=0 // pred_fallthru
    _
  // Predicated region
  $region14: #{_lambda_.1} parent=0 // pred_check
    _
  $region15: #{_lambda_.1} parent=0 // pred_check_branch
    %19 = sbr.rel (0) target = $region17
  $region16: #{_lambda_.1} parent=0 // pred_region
    _
  $region17: #{_lambda_.1} parent=0 // pred_fallthru
    _
  // Predicated region
  $region18: #{_lambda_.1} parent=0 // pred_check
    _
  $region19: #{_lambda_.1} parent=0 // pred_check_branch
    %21 = sbr.rel (0) target = $region21
  $region20: #{_lambda_.1} parent=0 // pred_region
    _
  $region21: #{_lambda_.1} parent=0 // pred_fallthru
    _
  // Predicated region
  $region22: #{_lambda_.1} parent=0 // pred_check
    _
  $region23: #{_lambda_.1} parent=0 // pred_check_branch
    %23 = sbr.rel (0) target = $region25
  $region24: #{_lambda_.1} parent=0 // pred_region
    _
  $region25: #{_lambda_.1} parent=0 // pred_fallthru
    _
  // Predicated region
  $region26: #{_lambda_.1} parent=0 // pred_check
    _
  $region27: #{_lambda_.1} parent=0 // pred_check_branch
    %25 = sbr.rel (0) target = $region29
  $region28: #{_lambda_.1} parent=0 // pred_region
    _
  $region29: #{_lambda_.1} parent=0 // pred_fallthru
    _
  loop: start=0, step=1, limit=15
  $region30: #{_lambda_.1} parent=0 // loop_pre_header
    _
  $region31: #{_lambda_.1} parent=0 // loop_header
    %s27 = sphi 0, %s31
    %p28 = scmp.ge.s32.totalorder %s27, 15
    %v32 = vphi 0.0, %v1449
    %v33 = vphi 0.0, %v1447
  $region32: #{_lambda_.1} parent=0 // loop_header_branch
    %30 = sbr.rel (%p28) target = $region36
  $region33: #{_lambda_.1} parent=0 // loop_body
    %s34 = smul.u32 %s27, 8
    %s35 = smul.u32 %s34, 4
    %s36 = smul.addr %s35, 8
    %s37 = scalar_lea.vmem %s0, %s36
    %v38 = vld [vmem:[%s37] sm:$0xff]
    %v39 = vld [vmem:[%s37 + $0x8] sm:$0xff]
    %v40 = vld [vmem:[%s37 + $0x10] sm:$0xff]
    %v41 = vld [vmem:[%s37 + $0x18] sm:$0xff]
    %v42 = vld [vmem:[%s1] sm:$0xff]
    %v43 = vld [vmem:[%s1 + $0x8] sm:$0xff]
    %v44 = vld [vmem:[%s1 + $0x10] sm:$0xff]
    %v45 = vld [vmem:[%s1 + $0x18] sm:$0xff]
    %v46 = vld [vmem:[%s1 + $0x20] sm:$0xff]
    %v47 = vld [vmem:[%s1 + $0x28] sm:$0xff]
    %v48 = vld [vmem:[%s1 + $0x30] sm:$0xff]
    %v49 = vld [vmem:[%s1 + $0x38] sm:$0xff]
    %v50 = vld [vmem:[%s1 + $0x40] sm:$0xff]
    %v51 = vld [vmem:[%s1 + $0x48] sm:$0xff]
    %v52 = vld [vmem:[%s1 + $0x50] sm:$0xff]
    %v53 = vld [vmem:[%s1 + $0x58] sm:$0xff]
    %v54 = vld [vmem:[%s1 + $0x60] sm:$0xff]
    %v55 = vld [vmem:[%s1 + $0x68] sm:$0xff]
    %v56 = vld [vmem:[%s1 + $0x70] sm:$0xff]
    %v57 = vld [vmem:[%s1 + $0x78] sm:$0xff]
    %v58 = vld [vmem:[%s1 + $0x80] sm:$0xff]
    %v59 = vld [vmem:[%s1 + $0x88] sm:$0xff]
    %v60 = vld [vmem:[%s1 + $0x90] sm:$0xff]
    %v61 = vld [vmem:[%s1 + $0x98] sm:$0xff]
    %v62 = vld [vmem:[%s1 + $0xa0] sm:$0xff]
    %v63 = vld [vmem:[%s1 + $0xa8] sm:$0xff]
    %v64 = vld [vmem:[%s1 + $0xb0] sm:$0xff]
    %v65 = vld [vmem:[%s1 + $0xb8] sm:$0xff]
    %v66 = vld [vmem:[%s1 + $0xc0] sm:$0xff]
    %v67 = vld [vmem:[%s1 + $0xc8] sm:$0xff]
    %v68 = vld [vmem:[%s1 + $0xd0] sm:$0xff]
    %v69 = vld [vmem:[%s1 + $0xd8] sm:$0xff]
    %v70 = vld [vmem:[%s1 + $0xe0] sm:$0xff]
    %v71 = vld [vmem:[%s1 + $0xe8] sm:$0xff]
    %v72 = vld [vmem:[%s1 + $0xf0] sm:$0xff]
    %v73 = vld [vmem:[%s1 + $0xf8] sm:$0xff]
    %v74 = vld [vmem:[%s1 + $0x100] sm:$0xff]
    %v75 = vld [vmem:[%s1 + $0x108] sm:$0xff]
    %v76 = vld [vmem:[%s1 + $0x110] sm:$0xff]
    %v77 = vld [vmem:[%s1 + $0x118] sm:$0xff]
    %v78 = vld [vmem:[%s1 + $0x120] sm:$0xff]
    %v79 = vld [vmem:[%s1 + $0x128] sm:$0xff]
    %v80 = vld [vmem:[%s1 + $0x130] sm:$0xff]
    %v81 = vld [vmem:[%s1 + $0x138] sm:$0xff]
    %v82 = vld [vmem:[%s1 + $0x140] sm:$0xff]
    %v83 = vld [vmem:[%s1 + $0x148] sm:$0xff]
    %v84 = vld [vmem:[%s1 + $0x150] sm:$0xff]
    %v85 = vld [vmem:[%s1 + $0x158] sm:$0xff]
    %v86 = vld [vmem:[%s1 + $0x160] sm:$0xff]
    %v87 = vld [vmem:[%s1 + $0x168] sm:$0xff]
    %v88 = vld [vmem:[%s1 + $0x170] sm:$0xff]
    %v89 = vld [vmem:[%s1 + $0x178] sm:$0xff]
    %v90 = vld [vmem:[%s1 + $0x180] sm:$0xff]
    %v91 = vld [vmem:[%s1 + $0x188] sm:$0xff]
    %v92 = vld [vmem:[%s1 + $0x190] sm:$0xff]
    %v93 = vld [vmem:[%s1 + $0x198] sm:$0xff]
    %v94 = vld [vmem:[%s1 + $0x1a0] sm:$0xff]
    %v95 = vld [vmem:[%s1 + $0x1a8] sm:$0xff]
    %v96 = vld [vmem:[%s1 + $0x1b0] sm:$0xff]
    %v97 = vld [vmem:[%s1 + $0x1b8] sm:$0xff]
    %v98 = vld [vmem:[%s1 + $0x1c0] sm:$0xff]
    %v99 = vld [vmem:[%s1 + $0x1c8] sm:$0xff]
    %v100 = vld [vmem:[%s1 + $0x1d0] sm:$0xff]
    %v101 = vld [vmem:[%s1 + $0x1d8] sm:$0xff]
    %v102 = vld [vmem:[%s1 + $0x1e0] sm:$0xff]
    %v103 = vld [vmem:[%s1 + $0x1e8] sm:$0xff]
    %v104 = vld [vmem:[%s1 + $0x1f0] sm:$0xff]
    %v105 = vld [vmem:[%s1 + $0x1f8] sm:$0xff]
    %106 = vmatprep.subr.mxu0 %v103
    %107 = vmatpush1.msra.mxu0 %v102
    %108 = vmatprep.subr.mxu0 %v99
    %109 = vmatpush1.msra.mxu0 %v98
    %110 = vmatprep.subr.mxu0 %v95
    %111 = vmatpush1.msra.mxu0 %v94
    %112 = vmatprep.subr.mxu0 %v91
    %113 = vmatpush1.msra.mxu0 %v90
    %114 = vmatprep.subr.mxu0 %v87
    %115 = vmatpush1.msra.mxu0 %v86
    %116 = vmatprep.subr.mxu0 %v83
    %117 = vmatpush1.msra.mxu0 %v82
    %118 = vmatprep.subr.mxu0 %v79
    %119 = vmatpush1.msra.mxu0 %v78
    %120 = vmatprep.subr.mxu0 %v75
    %121 = vmatpush1.msra.mxu0 %v74
    %122 = vmatprep.subr.mxu0 %v71
    %123 = vmatpush1.msra.mxu0 %v70
    %124 = vmatprep.subr.mxu0 %v67
    %125 = vmatpush1.msra.mxu0 %v66
    %126 = vmatprep.subr.mxu0 %v63
    %127 = vmatpush1.msra.mxu0 %v62
    %128 = vmatprep.subr.mxu0 %v59
    %129 = vmatpush1.msra.mxu0 %v58
    %130 = vmatprep.subr.mxu0 %v55
    %131 = vmatpush1.msra.mxu0 %v54
    %132 = vmatprep.subr.mxu0 %v51
    %133 = vmatpush1.msra.mxu0 %v50
    %134 = vmatprep.subr.mxu0 %v47
    %135 = vmatpush1.msra.mxu0 %v46
    %136 = vmatprep.subr.mxu0 %v43
    %137 = vmatpush1.msra.mxu0 %v42
    %138 = vmatprep.subr.mxu0 0.0
    %139 = vmatpush2.msra.mxu0 0.0
    %140 = vmatprep.subr.mxu0 0.0
    %141 = vmatpush2.msra.mxu0 0.0
    %142 = vmatprep.subr.mxu0 0.0
    %143 = vmatpush2.msra.mxu0 0.0
    %144 = vmatprep.subr.mxu0 0.0
    %145 = vmatpush2.msra.mxu0 0.0
    %146 = vmatprep.subr.mxu0 0.0
    %147 = vmatpush2.msra.mxu0 0.0
    %148 = vmatprep.subr.mxu0 0.0
    %149 = vmatpush2.msra.mxu0 0.0
    %150 = vmatprep.subr.mxu0 0.0
    %151 = vmatpush2.msra.mxu0 0.0
    %152 = vmatprep.subr.mxu0 0.0
    %153 = vmatpush2.msra.mxu0 0.0
    %154 = vmatprep.subr.mxu0 0.0
    %155 = vmatpush2.msra.mxu0 0.0
    %156 = vmatprep.subr.mxu0 0.0
    %157 = vmatpush2.msra.mxu0 0.0
    %158 = vmatprep.subr.mxu0 0.0
    %159 = vmatpush2.msra.mxu0 0.0
    %160 = vmatprep.subr.mxu0 0.0
    %161 = vmatpush2.msra.mxu0 0.0
    %162 = vmatprep.subr.mxu0 0.0
    %163 = vmatpush2.msra.mxu0 0.0
    %164 = vmatprep.subr.mxu0 0.0
    %165 = vmatpush2.msra.mxu0 0.0
    %166 = vmatprep.subr.mxu0 0.0
    %167 = vmatpush2.msra.mxu0 0.0
    %168 = vmatprep.subr.mxu0 0.0
    %169 = vmatpush2.msra.mxu0 0.0
    %170 = vmatprep.mubr.f32.mxu0 0.0
    %171 = vmatmul.mubr.f32.gmra.mxu0 %v32
    %v172 = vpop.f32.mrf.mxu0
    %v173 = vadd.f32 0.0, %v172
    %v174 = vpop.f32.mrf.mxu0
    %v175 = vadd.f32 0.0, %v174
    %176 = vdwg.mxu0
    %177 = vmatprep.subr.mxu0 %v105
    %178 = vmatpush1.msra.mxu0 %v104
    %179 = vmatprep.subr.mxu0 %v101
    %180 = vmatpush1.msra.mxu0 %v100
    %181 = vmatprep.subr.mxu0 %v97
    %182 = vmatpush1.msra.mxu0 %v96
    %183 = vmatprep.subr.mxu0 %v93
    %184 = vmatpush1.msra.mxu0 %v92
    %185 = vmatprep.subr.mxu0 %v89
    %186 = vmatpush1.msra.mxu0 %v88
    %187 = vmatprep.subr.mxu0 %v85
    %188 = vmatpush1.msra.mxu0 %v84
    %189 = vmatprep.subr.mxu0 %v81
    %190 = vmatpush1.msra.mxu0 %v80
    %191 = vmatprep.subr.mxu0 %v77
    %192 = vmatpush1.msra.mxu0 %v76
    %193 = vmatprep.subr.mxu0 %v73
    %194 = vmatpush1.msra.mxu0 %v72
    %195 = vmatprep.subr.mxu0 %v69
    %196 = vmatpush1.msra.mxu0 %v68
    %197 = vmatprep.subr.mxu0 %v65
    %198 = vmatpush1.msra.mxu0 %v64
    %199 = vmatprep.subr.mxu0 %v61
    %200 = vmatpush1.msra.mxu0 %v60
    %201 = vmatprep.subr.mxu0 %v57
    %202 = vmatpush1.msra.mxu0 %v56
    %203 = vmatprep.subr.mxu0 %v53
    %204 = vmatpush1.msra.mxu0 %v52
    %205 = vmatprep.subr.mxu0 %v49
    %206 = vmatpush1.msra.mxu0 %v48
    %207 = vmatprep.subr.mxu0 %v45
    %208 = vmatpush1.msra.mxu0 %v44
    %209 = vmatprep.subr.mxu0 0.0
    %210 = vmatpush2.msra.mxu0 0.0
    %211 = vmatprep.subr.mxu0 0.0
    %212 = vmatpush2.msra.mxu0 0.0
    %213 = vmatprep.subr.mxu0 0.0
    %214 = vmatpush2.msra.mxu0 0.0
    %215 = vmatprep.subr.mxu0 0.0
    %216 = vmatpush2.msra.mxu0 0.0
    %217 = vmatprep.subr.mxu0 0.0
    %218 = vmatpush2.msra.mxu0 0.0
    %219 = vmatprep.subr.mxu0 0.0
    %220 = vmatpush2.msra.mxu0 0.0
    %221 = vmatprep.subr.mxu0 0.0
    %222 = vmatpush2.msra.mxu0 0.0
    %223 = vmatprep.subr.mxu0 0.0
    %224 = vmatpush2.msra.mxu0 0.0
    %225 = vmatprep.subr.mxu0 0.0
    %226 = vmatpush2.msra.mxu0 0.0
    %227 = vmatprep.subr.mxu0 0.0
    %228 = vmatpush2.msra.mxu0 0.0
    %229 = vmatprep.subr.mxu0 0.0
    %230 = vmatpush2.msra.mxu0 0.0
    %231 = vmatprep.subr.mxu0 0.0
    %232 = vmatpush2.msra.mxu0 0.0
    %233 = vmatprep.subr.mxu0 0.0
    %234 = vmatpush2.msra.mxu0 0.0
    %235 = vmatprep.subr.mxu0 0.0
    %236 = vmatpush2.msra.mxu0 0.0
    %237 = vmatprep.subr.mxu0 0.0
    %238 = vmatpush2.msra.mxu0 0.0
    %239 = vmatprep.subr.mxu0 0.0
    %240 = vmatpush2.msra.mxu0 0.0
    %241 = vmatprep.mubr.f32.mxu0 0.0
    %242 = vmatmul.mubr.f32.gmra.mxu0 %v32
    %v243 = vpop.f32.mrf.mxu0
    %v244 = vadd.f32 0.0, %v243
    %v245 = vpop.f32.mrf.mxu0
    %v246 = vadd.f32 0.0, %v245
    %247 = vdwg.mxu0
    %v248 = vadd.f32 %v38, %v173
    %v249 = vadd.f32 %v39, %v175
    %v250 = vadd.f32 %v40, %v244
    %v251 = vadd.f32 %v41, %v246
    %v252 = vtanh.pop %v248
    %v253 = vtanh.pop %v249
    %v254 = vtanh.pop %v250
    %v255 = vmul.f32 %v252, 0.5
    %v256 = vmul.f32 %v253, 0.5
    %v257 = vmul.f32 %v254, 0.5
    %v258 = vadd.f32 %v255, 0.5
    %v259 = vadd.f32 %v256, 0.5
    %v260 = vadd.f32 %v257, 0.5
    %v261 = vtanh.pop %v251
    %v262 = vmul.f32 %v259, %v33
    %v263 = vmul.f32 %v258, %v261
    %v264 = vadd.f32 %v262, %v263
    %v265 = vtanh.pop %v264
    %v266 = vmul.f32 %v260, %v265
    %s267 = sadd.s32 %s34, 1
    %s268 = smul.u32 %s267, 4
    %s269 = smul.addr %s268, 8
    %s270 = scalar_lea.vmem %s0, %s269
    %v271 = vld [vmem:[%s270] sm:$0xff]
    %v272 = vld [vmem:[%s270 + $0x8] sm:$0xff]
    %v273 = vld [vmem:[%s270 + $0x10] sm:$0xff]
    %v274 = vld [vmem:[%s270 + $0x18] sm:$0xff]
    %275 = vmatprep.subr.mxu0 %v103
    %276 = vmatpush1.msra.mxu0 %v102
    %277 = vmatprep.subr.mxu0 %v99
    %278 = vmatpush1.msra.mxu0 %v98
    %279 = vmatprep.subr.mxu0 %v95
    %280 = vmatpush1.msra.mxu0 %v94
    %281 = vmatprep.subr.mxu0 %v91
    %282 = vmatpush1.msra.mxu0 %v90
    %283 = vmatprep.subr.mxu0 %v87
    %284 = vmatpush1.msra.mxu0 %v86
    %285 = vmatprep.subr.mxu0 %v83
    %286 = vmatpush1.msra.mxu0 %v82
    %287 = vmatprep.subr.mxu0 %v79
    %288 = vmatpush1.msra.mxu0 %v78
    %289 = vmatprep.subr.mxu0 %v75
    %290 = vmatpush1.msra.mxu0 %v74
    %291 = vmatprep.subr.mxu0 %v71
    %292 = vmatpush1.msra.mxu0 %v70
    %293 = vmatprep.subr.mxu0 %v67
    %294 = vmatpush1.msra.mxu0 %v66
    %295 = vmatprep.subr.mxu0 %v63
    %296 = vmatpush1.msra.mxu0 %v62
    %297 = vmatprep.subr.mxu0 %v59
    %298 = vmatpush1.msra.mxu0 %v58
    %299 = vmatprep.subr.mxu0 %v55
    %300 = vmatpush1.msra.mxu0 %v54
    %301 = vmatprep.subr.mxu0 %v51
    %302 = vmatpush1.msra.mxu0 %v50
    %303 = vmatprep.subr.mxu0 %v47
    %304 = vmatpush1.msra.mxu0 %v46
    %305 = vmatprep.subr.mxu0 %v43
    %306 = vmatpush1.msra.mxu0 %v42
    %307 = vmatprep.subr.mxu0 0.0
    %308 = vmatpush2.msra.mxu0 0.0
    %309 = vmatprep.subr.mxu0 0.0
    %310 = vmatpush2.msra.mxu0 0.0
    %311 = vmatprep.subr.mxu0 0.0
    %312 = vmatpush2.msra.mxu0 0.0
    %313 = vmatprep.subr.mxu0 0.0
    %314 = vmatpush2.msra.mxu0 0.0
    %315 = vmatprep.subr.mxu0 0.0
    %316 = vmatpush2.msra.mxu0 0.0
    %317 = vmatprep.subr.mxu0 0.0
    %318 = vmatpush2.msra.mxu0 0.0
    %319 = vmatprep.subr.mxu0 0.0
    %320 = vmatpush2.msra.mxu0 0.0
    %321 = vmatprep.subr.mxu0 0.0
    %322 = vmatpush2.msra.mxu0 0.0
    %323 = vmatprep.subr.mxu0 0.0
    %324 = vmatpush2.msra.mxu0 0.0
    %325 = vmatprep.subr.mxu0 0.0
    %326 = vmatpush2.msra.mxu0 0.0
    %327 = vmatprep.subr.mxu0 0.0
    %328 = vmatpush2.msra.mxu0 0.0
    %329 = vmatprep.subr.mxu0 0.0
    %330 = vmatpush2.msra.mxu0 0.0
    %331 = vmatprep.subr.mxu0 0.0
    %332 = vmatpush2.msra.mxu0 0.0
    %333 = vmatprep.subr.mxu0 0.0
    %334 = vmatpush2.msra.mxu0 0.0
    %335 = vmatprep.subr.mxu0 0.0
    %336 = vmatpush2.msra.mxu0 0.0
    %337 = vmatprep.subr.mxu0 0.0
    %338 = vmatpush2.msra.mxu0 0.0
    %339 = vmatprep.mubr.f32.mxu0 0.0
    %340 = vmatmul.mubr.f32.gmra.mxu0 %v266
    %v341 = vpop.f32.mrf.mxu0
    %v342 = vadd.f32 0.0, %v341
    %v343 = vpop.f32.mrf.mxu0
    %v344 = vadd.f32 0.0, %v343
    %345 = vdwg.mxu0
    %346 = vmatprep.subr.mxu0 %v105
    %347 = vmatpush1.msra.mxu0 %v104
    %348 = vmatprep.subr.mxu0 %v101
    %349 = vmatpush1.msra.mxu0 %v100
    %350 = vmatprep.subr.mxu0 %v97
    %351 = vmatpush1.msra.mxu0 %v96
    %352 = vmatprep.subr.mxu0 %v93
    %353 = vmatpush1.msra.mxu0 %v92
    %354 = vmatprep.subr.mxu0 %v89
    %355 = vmatpush1.msra.mxu0 %v88
    %356 = vmatprep.subr.mxu0 %v85
    %357 = vmatpush1.msra.mxu0 %v84
    %358 = vmatprep.subr.mxu0 %v81
    %359 = vmatpush1.msra.mxu0 %v80
    %360 = vmatprep.subr.mxu0 %v77
    %361 = vmatpush1.msra.mxu0 %v76
    %362 = vmatprep.subr.mxu0 %v73
    %363 = vmatpush1.msra.mxu0 %v72
    %364 = vmatprep.subr.mxu0 %v69
    %365 = vmatpush1.msra.mxu0 %v68
    %366 = vmatprep.subr.mxu0 %v65
    %367 = vmatpush1.msra.mxu0 %v64
    %368 = vmatprep.subr.mxu0 %v61
    %369 = vmatpush1.msra.mxu0 %v60
    %370 = vmatprep.subr.mxu0 %v57
    %371 = vmatpush1.msra.mxu0 %v56
    %372 = vmatprep.subr.mxu0 %v53
    %373 = vmatpush1.msra.mxu0 %v52
    %374 = vmatprep.subr.mxu0 %v49
    %375 = vmatpush1.msra.mxu0 %v48
    %376 = vmatprep.subr.mxu0 %v45
    %377 = vmatpush1.msra.mxu0 %v44
    %378 = vmatprep.subr.mxu0 0.0
    %379 = vmatpush2.msra.mxu0 0.0
    %380 = vmatprep.subr.mxu0 0.0
    %381 = vmatpush2.msra.mxu0 0.0
    %382 = vmatprep.subr.mxu0 0.0
    %383 = vmatpush2.msra.mxu0 0.0
    %384 = vmatprep.subr.mxu0 0.0
    %385 = vmatpush2.msra.mxu0 0.0
    %386 = vmatprep.subr.mxu0 0.0
    %387 = vmatpush2.msra.mxu0 0.0
    %388 = vmatprep.subr.mxu0 0.0
    %389 = vmatpush2.msra.mxu0 0.0
    %390 = vmatprep.subr.mxu0 0.0
    %391 = vmatpush2.msra.mxu0 0.0
    %392 = vmatprep.subr.mxu0 0.0
    %393 = vmatpush2.msra.mxu0 0.0
    %394 = vmatprep.subr.mxu0 0.0
    %395 = vmatpush2.msra.mxu0 0.0
    %396 = vmatprep.subr.mxu0 0.0
    %397 = vmatpush2.msra.mxu0 0.0
    %398 = vmatprep.subr.mxu0 0.0
    %399 = vmatpush2.msra.mxu0 0.0
    %400 = vmatprep.subr.mxu0 0.0
    %401 = vmatpush2.msra.mxu0 0.0
    %402 = vmatprep.subr.mxu0 0.0
    %403 = vmatpush2.msra.mxu0 0.0
    %404 = vmatprep.subr.mxu0 0.0
    %405 = vmatpush2.msra.mxu0 0.0
    %406 = vmatprep.subr.mxu0 0.0
    %407 = vmatpush2.msra.mxu0 0.0
    %408 = vmatprep.subr.mxu0 0.0
    %409 = vmatpush2.msra.mxu0 0.0
    %410 = vmatprep.mubr.f32.mxu0 0.0
    %411 = vmatmul.mubr.f32.gmra.mxu0 %v266
    %v412 = vpop.f32.mrf.mxu0
    %v413 = vadd.f32 0.0, %v412
    %v414 = vpop.f32.mrf.mxu0
    %v415 = vadd.f32 0.0, %v414
    %416 = vdwg.mxu0
    %v417 = vadd.f32 %v271, %v342
    %v418 = vadd.f32 %v272, %v344
    %v419 = vadd.f32 %v273, %v413
    %v420 = vadd.f32 %v274, %v415
    %v421 = vtanh.pop %v417
    %v422 = vtanh.pop %v418
    %v423 = vtanh.pop %v419
    %v424 = vmul.f32 %v421, 0.5
    %v425 = vmul.f32 %v422, 0.5
    %v426 = vmul.f32 %v423, 0.5
    %v427 = vadd.f32 %v424, 0.5
    %v428 = vadd.f32 %v425, 0.5
    %v429 = vadd.f32 %v426, 0.5
    %v430 = vtanh.pop %v420
    %v431 = vmul.f32 %v428, %v264
    %v432 = vmul.f32 %v427, %v430
    %v433 = vadd.f32 %v431, %v432
    %v434 = vtanh.pop %v433
    %v435 = vmul.f32 %v429, %v434
    %s436 = sadd.s32 %s34, 2
    %s437 = smul.u32 %s436, 4
    %s438 = smul.addr %s437, 8
    %s439 = scalar_lea.vmem %s0, %s438
    %v440 = vld [vmem:[%s439] sm:$0xff]
    %v441 = vld [vmem:[%s439 + $0x8] sm:$0xff]
    %v442 = vld [vmem:[%s439 + $0x10] sm:$0xff]
    %v443 = vld [vmem:[%s439 + $0x18] sm:$0xff]
    %444 = vmatprep.subr.mxu0 %v103
    %445 = vmatpush1.msra.mxu0 %v102
    %446 = vmatprep.subr.mxu0 %v99
    %447 = vmatpush1.msra.mxu0 %v98
    %448 = vmatprep.subr.mxu0 %v95
    %449 = vmatpush1.msra.mxu0 %v94
    %450 = vmatprep.subr.mxu0 %v91
    %451 = vmatpush1.msra.mxu0 %v90
    %452 = vmatprep.subr.mxu0 %v87
    %453 = vmatpush1.msra.mxu0 %v86
    %454 = vmatprep.subr.mxu0 %v83
    %455 = vmatpush1.msra.mxu0 %v82
    %456 = vmatprep.subr.mxu0 %v79
    %457 = vmatpush1.msra.mxu0 %v78
    %458 = vmatprep.subr.mxu0 %v75
    %459 = vmatpush1.msra.mxu0 %v74
    %460 = vmatprep.subr.mxu0 %v71
    %461 = vmatpush1.msra.mxu0 %v70
    %462 = vmatprep.subr.mxu0 %v67
    %463 = vmatpush1.msra.mxu0 %v66
    %464 = vmatprep.subr.mxu0 %v63
    %465 = vmatpush1.msra.mxu0 %v62
    %466 = vmatprep.subr.mxu0 %v59
    %467 = vmatpush1.msra.mxu0 %v58
    %468 = vmatprep.subr.mxu0 %v55
    %469 = vmatpush1.msra.mxu0 %v54
    %470 = vmatprep.subr.mxu0 %v51
    %471 = vmatpush1.msra.mxu0 %v50
    %472 = vmatprep.subr.mxu0 %v47
    %473 = vmatpush1.msra.mxu0 %v46
    %474 = vmatprep.subr.mxu0 %v43
    %475 = vmatpush1.msra.mxu0 %v42
    %476 = vmatprep.subr.mxu0 0.0
    %477 = vmatpush2.msra.mxu0 0.0
    %478 = vmatprep.subr.mxu0 0.0
    %479 = vmatpush2.msra.mxu0 0.0
    %480 = vmatprep.subr.mxu0 0.0
    %481 = vmatpush2.msra.mxu0 0.0
    %482 = vmatprep.subr.mxu0 0.0
    %483 = vmatpush2.msra.mxu0 0.0
    %484 = vmatprep.subr.mxu0 0.0
    %485 = vmatpush2.msra.mxu0 0.0
    %486 = vmatprep.subr.mxu0 0.0
    %487 = vmatpush2.msra.mxu0 0.0
    %488 = vmatprep.subr.mxu0 0.0
    %489 = vmatpush2.msra.mxu0 0.0
    %490 = vmatprep.subr.mxu0 0.0
    %491 = vmatpush2.msra.mxu0 0.0
    %492 = vmatprep.subr.mxu0 0.0
    %493 = vmatpush2.msra.mxu0 0.0
    %494 = vmatprep.subr.mxu0 0.0
    %495 = vmatpush2.msra.mxu0 0.0
    %496 = vmatprep.subr.mxu0 0.0
    %497 = vmatpush2.msra.mxu0 0.0
    %498 = vmatprep.subr.mxu0 0.0
    %499 = vmatpush2.msra.mxu0 0.0
    %500 = vmatprep.subr.mxu0 0.0
    %501 = vmatpush2.msra.mxu0 0.0
    %502 = vmatprep.subr.mxu0 0.0
    %503 = vmatpush2.msra.mxu0 0.0
    %504 = vmatprep.subr.mxu0 0.0
    %505 = vmatpush2.msra.mxu0 0.0
    %506 = vmatprep.subr.mxu0 0.0
    %507 = vmatpush2.msra.mxu0 0.0
    %508 = vmatprep.mubr.f32.mxu0 0.0
    %509 = vmatmul.mubr.f32.gmra.mxu0 %v435
    %v510 = vpop.f32.mrf.mxu0
    %v511 = vadd.f32 0.0, %v510
    %v512 = vpop.f32.mrf.mxu0
    %v513 = vadd.f32 0.0, %v512
    %514 = vdwg.mxu0
    %515 = vmatprep.subr.mxu0 %v105
    %516 = vmatpush1.msra.mxu0 %v104
    %517 = vmatprep.subr.mxu0 %v101
    %518 = vmatpush1.msra.mxu0 %v100
    %519 = vmatprep.subr.mxu0 %v97
    %520 = vmatpush1.msra.mxu0 %v96
    %521 = vmatprep.subr.mxu0 %v93
    %522 = vmatpush1.msra.mxu0 %v92
    %523 = vmatprep.subr.mxu0 %v89
    %524 = vmatpush1.msra.mxu0 %v88
    %525 = vmatprep.subr.mxu0 %v85
    %526 = vmatpush1.msra.mxu0 %v84
    %527 = vmatprep.subr.mxu0 %v81
    %528 = vmatpush1.msra.mxu0 %v80
    %529 = vmatprep.subr.mxu0 %v77
    %530 = vmatpush1.msra.mxu0 %v76
    %531 = vmatprep.subr.mxu0 %v73
    %532 = vmatpush1.msra.mxu0 %v72
    %533 = vmatprep.subr.mxu0 %v69
    %534 = vmatpush1.msra.mxu0 %v68
    %535 = vmatprep.subr.mxu0 %v65
    %536 = vmatpush1.msra.mxu0 %v64
    %537 = vmatprep.subr.mxu0 %v61
    %538 = vmatpush1.msra.mxu0 %v60
    %539 = vmatprep.subr.mxu0 %v57
    %540 = vmatpush1.msra.mxu0 %v56
    %541 = vmatprep.subr.mxu0 %v53
    %542 = vmatpush1.msra.mxu0 %v52
    %543 = vmatprep.subr.mxu0 %v49
    %544 = vmatpush1.msra.mxu0 %v48
    %545 = vmatprep.subr.mxu0 %v45
    %546 = vmatpush1.msra.mxu0 %v44
    %547 = vmatprep.subr.mxu0 0.0
    %548 = vmatpush2.msra.mxu0 0.0
    %549 = vmatprep.subr.mxu0 0.0
    %550 = vmatpush2.msra.mxu0 0.0
    %551 = vmatprep.subr.mxu0 0.0
    %552 = vmatpush2.msra.mxu0 0.0
    %553 = vmatprep.subr.mxu0 0.0
    %554 = vmatpush2.msra.mxu0 0.0
    %555 = vmatprep.subr.mxu0 0.0
    %556 = vmatpush2.msra.mxu0 0.0
    %557 = vmatprep.subr.mxu0 0.0
    %558 = vmatpush2.msra.mxu0 0.0
    %559 = vmatprep.subr.mxu0 0.0
    %560 = vmatpush2.msra.mxu0 0.0
    %561 = vmatprep.subr.mxu0 0.0
    %562 = vmatpush2.msra.mxu0 0.0
    %563 = vmatprep.subr.mxu0 0.0
    %564 = vmatpush2.msra.mxu0 0.0
    %565 = vmatprep.subr.mxu0 0.0
    %566 = vmatpush2.msra.mxu0 0.0
    %567 = vmatprep.subr.mxu0 0.0
    %568 = vmatpush2.msra.mxu0 0.0
    %569 = vmatprep.subr.mxu0 0.0
    %570 = vmatpush2.msra.mxu0 0.0
    %571 = vmatprep.subr.mxu0 0.0
    %572 = vmatpush2.msra.mxu0 0.0
    %573 = vmatprep.subr.mxu0 0.0
    %574 = vmatpush2.msra.mxu0 0.0
    %575 = vmatprep.subr.mxu0 0.0
    %576 = vmatpush2.msra.mxu0 0.0
    %577 = vmatprep.subr.mxu0 0.0
    %578 = vmatpush2.msra.mxu0 0.0
    %579 = vmatprep.mubr.f32.mxu0 0.0
    %580 = vmatmul.mubr.f32.gmra.mxu0 %v435
    %v581 = vpop.f32.mrf.mxu0
    %v582 = vadd.f32 0.0, %v581
    %v583 = vpop.f32.mrf.mxu0
    %v584 = vadd.f32 0.0, %v583
    %585 = vdwg.mxu0
    %v586 = vadd.f32 %v440, %v511
    %v587 = vadd.f32 %v441, %v513
    %v588 = vadd.f32 %v442, %v582
    %v589 = vadd.f32 %v443, %v584
    %v590 = vtanh.pop %v586
    %v591 = vtanh.pop %v587
    %v592 = vtanh.pop %v588
    %v593 = vmul.f32 %v590, 0.5
    %v594 = vmul.f32 %v591, 0.5
    %v595 = vmul.f32 %v592, 0.5
    %v596 = vadd.f32 %v593, 0.5
    %v597 = vadd.f32 %v594, 0.5
    %v598 = vadd.f32 %v595, 0.5
    %v599 = vtanh.pop %v589
    %v600 = vmul.f32 %v597, %v433
    %v601 = vmul.f32 %v596, %v599
    %v602 = vadd.f32 %v600, %v601
    %v603 = vtanh.pop %v602
    %v604 = vmul.f32 %v598, %v603
    %s605 = sadd.s32 %s34, 3
    %s606 = smul.u32 %s605, 4
    %s607 = smul.addr %s606, 8
    %s608 = scalar_lea.vmem %s0, %s607
    %v609 = vld [vmem:[%s608] sm:$0xff]
    %v610 = vld [vmem:[%s608 + $0x8] sm:$0xff]
    %v611 = vld [vmem:[%s608 + $0x10] sm:$0xff]
    %v612 = vld [vmem:[%s608 + $0x18] sm:$0xff]
    %613 = vmatprep.subr.mxu0 %v103
    %614 = vmatpush1.msra.mxu0 %v102
    %615 = vmatprep.subr.mxu0 %v99
    %616 = vmatpush1.msra.mxu0 %v98
    %617 = vmatprep.subr.mxu0 %v95
    %618 = vmatpush1.msra.mxu0 %v94
    %619 = vmatprep.subr.mxu0 %v91
    %620 = vmatpush1.msra.mxu0 %v90
    %621 = vmatprep.subr.mxu0 %v87
    %622 = vmatpush1.msra.mxu0 %v86
    %623 = vmatprep.subr.mxu0 %v83
    %624 = vmatpush1.msra.mxu0 %v82
    %625 = vmatprep.subr.mxu0 %v79
    %626 = vmatpush1.msra.mxu0 %v78
    %627 = vmatprep.subr.mxu0 %v75
    %628 = vmatpush1.msra.mxu0 %v74
    %629 = vmatprep.subr.mxu0 %v71
    %630 = vmatpush1.msra.mxu0 %v70
    %631 = vmatprep.subr.mxu0 %v67
    %632 = vmatpush1.msra.mxu0 %v66
    %633 = vmatprep.subr.mxu0 %v63
    %634 = vmatpush1.msra.mxu0 %v62
    %635 = vmatprep.subr.mxu0 %v59
    %636 = vmatpush1.msra.mxu0 %v58
    %637 = vmatprep.subr.mxu0 %v55
    %638 = vmatpush1.msra.mxu0 %v54
    %639 = vmatprep.subr.mxu0 %v51
    %640 = vmatpush1.msra.mxu0 %v50
    %641 = vmatprep.subr.mxu0 %v47
    %642 = vmatpush1.msra.mxu0 %v46
    %643 = vmatprep.subr.mxu0 %v43
    %644 = vmatpush1.msra.mxu0 %v42
    %645 = vmatprep.subr.mxu0 0.0
    %646 = vmatpush2.msra.mxu0 0.0
    %647 = vmatprep.subr.mxu0 0.0
    %648 = vmatpush2.msra.mxu0 0.0
    %649 = vmatprep.subr.mxu0 0.0
    %650 = vmatpush2.msra.mxu0 0.0
    %651 = vmatprep.subr.mxu0 0.0
    %652 = vmatpush2.msra.mxu0 0.0
    %653 = vmatprep.subr.mxu0 0.0
    %654 = vmatpush2.msra.mxu0 0.0
    %655 = vmatprep.subr.mxu0 0.0
    %656 = vmatpush2.msra.mxu0 0.0
    %657 = vmatprep.subr.mxu0 0.0
    %658 = vmatpush2.msra.mxu0 0.0
    %659 = vmatprep.subr.mxu0 0.0
    %660 = vmatpush2.msra.mxu0 0.0
    %661 = vmatprep.subr.mxu0 0.0
    %662 = vmatpush2.msra.mxu0 0.0
    %663 = vmatprep.subr.mxu0 0.0
    %664 = vmatpush2.msra.mxu0 0.0
    %665 = vmatprep.subr.mxu0 0.0
    %666 = vmatpush2.msra.mxu0 0.0
    %667 = vmatprep.subr.mxu0 0.0
    %668 = vmatpush2.msra.mxu0 0.0
    %669 = vmatprep.subr.mxu0 0.0
    %670 = vmatpush2.msra.mxu0 0.0
    %671 = vmatprep.subr.mxu0 0.0
    %672 = vmatpush2.msra.mxu0 0.0
    %673 = vmatprep.subr.mxu0 0.0
    %674 = vmatpush2.msra.mxu0 0.0
    %675 = vmatprep.subr.mxu0 0.0
    %676 = vmatpush2.msra.mxu0 0.0
    %677 = vmatprep.mubr.f32.mxu0 0.0
    %678 = vmatmul.mubr.f32.gmra.mxu0 %v604
    %v679 = vpop.f32.mrf.mxu0
    %v680 = vadd.f32 0.0, %v679
    %v681 = vpop.f32.mrf.mxu0
    %v682 = vadd.f32 0.0, %v681
    %683 = vdwg.mxu0
    %684 = vmatprep.subr.mxu0 %v105
    %685 = vmatpush1.msra.mxu0 %v104
    %686 = vmatprep.subr.mxu0 %v101
    %687 = vmatpush1.msra.mxu0 %v100
    %688 = vmatprep.subr.mxu0 %v97
    %689 = vmatpush1.msra.mxu0 %v96
    %690 = vmatprep.subr.mxu0 %v93
    %691 = vmatpush1.msra.mxu0 %v92
    %692 = vmatprep.subr.mxu0 %v89
    %693 = vmatpush1.msra.mxu0 %v88
    %694 = vmatprep.subr.mxu0 %v85
    %695 = vmatpush1.msra.mxu0 %v84
    %696 = vmatprep.subr.mxu0 %v81
    %697 = vmatpush1.msra.mxu0 %v80
    %698 = vmatprep.subr.mxu0 %v77
    %699 = vmatpush1.msra.mxu0 %v76
    %700 = vmatprep.subr.mxu0 %v73
    %701 = vmatpush1.msra.mxu0 %v72
    %702 = vmatprep.subr.mxu0 %v69
    %703 = vmatpush1.msra.mxu0 %v68
    %704 = vmatprep.subr.mxu0 %v65
    %705 = vmatpush1.msra.mxu0 %v64
    %706 = vmatprep.subr.mxu0 %v61
    %707 = vmatpush1.msra.mxu0 %v60
    %708 = vmatprep.subr.mxu0 %v57
    %709 = vmatpush1.msra.mxu0 %v56
    %710 = vmatprep.subr.mxu0 %v53
    %711 = vmatpush1.msra.mxu0 %v52
    %712 = vmatprep.subr.mxu0 %v49
    %713 = vmatpush1.msra.mxu0 %v48
    %714 = vmatprep.subr.mxu0 %v45
    %715 = vmatpush1.msra.mxu0 %v44
    %716 = vmatprep.subr.mxu0 0.0
    %717 = vmatpush2.msra.mxu0 0.0
    %718 = vmatprep.subr.mxu0 0.0
    %719 = vmatpush2.msra.mxu0 0.0
    %720 = vmatprep.subr.mxu0 0.0
    %721 = vmatpush2.msra.mxu0 0.0
    %722 = vmatprep.subr.mxu0 0.0
    %723 = vmatpush2.msra.mxu0 0.0
    %724 = vmatprep.subr.mxu0 0.0
    %725 = vmatpush2.msra.mxu0 0.0
    %726 = vmatprep.subr.mxu0 0.0
    %727 = vmatpush2.msra.mxu0 0.0
    %728 = vmatprep.subr.mxu0 0.0
    %729 = vmatpush2.msra.mxu0 0.0
    %730 = vmatprep.subr.mxu0 0.0
    %731 = vmatpush2.msra.mxu0 0.0
    %732 = vmatprep.subr.mxu0 0.0
    %733 = vmatpush2.msra.mxu0 0.0
    %734 = vmatprep.subr.mxu0 0.0
    %735 = vmatpush2.msra.mxu0 0.0
    %736 = vmatprep.subr.mxu0 0.0
    %737 = vmatpush2.msra.mxu0 0.0
    %738 = vmatprep.subr.mxu0 0.0
    %739 = vmatpush2.msra.mxu0 0.0
    %740 = vmatprep.subr.mxu0 0.0
    %741 = vmatpush2.msra.mxu0 0.0
    %742 = vmatprep.subr.mxu0 0.0
    %743 = vmatpush2.msra.mxu0 0.0
    %744 = vmatprep.subr.mxu0 0.0
    %745 = vmatpush2.msra.mxu0 0.0
    %746 = vmatprep.subr.mxu0 0.0
    %747 = vmatpush2.msra.mxu0 0.0
    %748 = vmatprep.mubr.f32.mxu0 0.0
    %749 = vmatmul.mubr.f32.gmra.mxu0 %v604
    %v750 = vpop.f32.mrf.mxu0
    %v751 = vadd.f32 0.0, %v750
    %v752 = vpop.f32.mrf.mxu0
    %v753 = vadd.f32 0.0, %v752
    %754 = vdwg.mxu0
    %v755 = vadd.f32 %v609, %v680
    %v756 = vadd.f32 %v610, %v682
    %v757 = vadd.f32 %v611, %v751
    %v758 = vadd.f32 %v612, %v753
    %v759 = vtanh.pop %v755
    %v760 = vtanh.pop %v756
    %v761 = vtanh.pop %v757
    %v762 = vmul.f32 %v759, 0.5
    %v763 = vmul.f32 %v760, 0.5
    %v764 = vmul.f32 %v761, 0.5
    %v765 = vadd.f32 %v762, 0.5
    %v766 = vadd.f32 %v763, 0.5
    %v767 = vadd.f32 %v764, 0.5
    %v768 = vtanh.pop %v758
    %v769 = vmul.f32 %v766, %v602
    %v770 = vmul.f32 %v765, %v768
    %v771 = vadd.f32 %v769, %v770
    %v772 = vtanh.pop %v771
    %v773 = vmul.f32 %v767, %v772
    %s774 = sadd.s32 %s34, 4
    %s775 = smul.u32 %s774, 4
    %s776 = smul.addr %s775, 8
    %s777 = scalar_lea.vmem %s0, %s776
    %v778 = vld [vmem:[%s777] sm:$0xff]
    %v779 = vld [vmem:[%s777 + $0x8] sm:$0xff]
    %v780 = vld [vmem:[%s777 + $0x10] sm:$0xff]
    %v781 = vld [vmem:[%s777 + $0x18] sm:$0xff]
    %782 = vmatprep.subr.mxu0 %v103
    %783 = vmatpush1.msra.mxu0 %v102
    %784 = vmatprep.subr.mxu0 %v99
    %785 = vmatpush1.msra.mxu0 %v98
    %786 = vmatprep.subr.mxu0 %v95
    %787 = vmatpush1.msra.mxu0 %v94
    %788 = vmatprep.subr.mxu0 %v91
    %789 = vmatpush1.msra.mxu0 %v90
    %790 = vmatprep.subr.mxu0 %v87
    %791 = vmatpush1.msra.mxu0 %v86
    %792 = vmatprep.subr.mxu0 %v83
    %793 = vmatpush1.msra.mxu0 %v82
    %794 = vmatprep.subr.mxu0 %v79
    %795 = vmatpush1.msra.mxu0 %v78
    %796 = vmatprep.subr.mxu0 %v75
    %797 = vmatpush1.msra.mxu0 %v74
    %798 = vmatprep.subr.mxu0 %v71
    %799 = vmatpush1.msra.mxu0 %v70
    %800 = vmatprep.subr.mxu0 %v67
    %801 = vmatpush1.msra.mxu0 %v66
    %802 = vmatprep.subr.mxu0 %v63
    %803 = vmatpush1.msra.mxu0 %v62
    %804 = vmatprep.subr.mxu0 %v59
    %805 = vmatpush1.msra.mxu0 %v58
    %806 = vmatprep.subr.mxu0 %v55
    %807 = vmatpush1.msra.mxu0 %v54
    %808 = vmatprep.subr.mxu0 %v51
    %809 = vmatpush1.msra.mxu0 %v50
    %810 = vmatprep.subr.mxu0 %v47
    %811 = vmatpush1.msra.mxu0 %v46
    %812 = vmatprep.subr.mxu0 %v43
    %813 = vmatpush1.msra.mxu0 %v42
    %814 = vmatprep.subr.mxu0 0.0
    %815 = vmatpush2.msra.mxu0 0.0
    %816 = vmatprep.subr.mxu0 0.0
    %817 = vmatpush2.msra.mxu0 0.0
    %818 = vmatprep.subr.mxu0 0.0
    %819 = vmatpush2.msra.mxu0 0.0
    %820 = vmatprep.subr.mxu0 0.0
    %821 = vmatpush2.msra.mxu0 0.0
    %822 = vmatprep.subr.mxu0 0.0
    %823 = vmatpush2.msra.mxu0 0.0
    %824 = vmatprep.subr.mxu0 0.0
    %825 = vmatpush2.msra.mxu0 0.0
    %826 = vmatprep.subr.mxu0 0.0
    %827 = vmatpush2.msra.mxu0 0.0
    %828 = vmatprep.subr.mxu0 0.0
    %829 = vmatpush2.msra.mxu0 0.0
    %830 = vmatprep.subr.mxu0 0.0
    %831 = vmatpush2.msra.mxu0 0.0
    %832 = vmatprep.subr.mxu0 0.0
    %833 = vmatpush2.msra.mxu0 0.0
    %834 = vmatprep.subr.mxu0 0.0
    %835 = vmatpush2.msra.mxu0 0.0
    %836 = vmatprep.subr.mxu0 0.0
    %837 = vmatpush2.msra.mxu0 0.0
    %838 = vmatprep.subr.mxu0 0.0
    %839 = vmatpush2.msra.mxu0 0.0
    %840 = vmatprep.subr.mxu0 0.0
    %841 = vmatpush2.msra.mxu0 0.0
    %842 = vmatprep.subr.mxu0 0.0
    %843 = vmatpush2.msra.mxu0 0.0
    %844 = vmatprep.subr.mxu0 0.0
    %845 = vmatpush2.msra.mxu0 0.0
    %846 = vmatprep.mubr.f32.mxu0 0.0
    %847 = vmatmul.mubr.f32.gmra.mxu0 %v773
    %v848 = vpop.f32.mrf.mxu0
    %v849 = vadd.f32 0.0, %v848
    %v850 = vpop.f32.mrf.mxu0
    %v851 = vadd.f32 0.0, %v850
    %852 = vdwg.mxu0
    %853 = vmatprep.subr.mxu0 %v105
    %854 = vmatpush1.msra.mxu0 %v104
    %855 = vmatprep.subr.mxu0 %v101
    %856 = vmatpush1.msra.mxu0 %v100
    %857 = vmatprep.subr.mxu0 %v97
    %858 = vmatpush1.msra.mxu0 %v96
    %859 = vmatprep.subr.mxu0 %v93
    %860 = vmatpush1.msra.mxu0 %v92
    %861 = vmatprep.subr.mxu0 %v89
    %862 = vmatpush1.msra.mxu0 %v88
    %863 = vmatprep.subr.mxu0 %v85
    %864 = vmatpush1.msra.mxu0 %v84
    %865 = vmatprep.subr.mxu0 %v81
    %866 = vmatpush1.msra.mxu0 %v80
    %867 = vmatprep.subr.mxu0 %v77
    %868 = vmatpush1.msra.mxu0 %v76
    %869 = vmatprep.subr.mxu0 %v73
    %870 = vmatpush1.msra.mxu0 %v72
    %871 = vmatprep.subr.mxu0 %v69
    %872 = vmatpush1.msra.mxu0 %v68
    %873 = vmatprep.subr.mxu0 %v65
    %874 = vmatpush1.msra.mxu0 %v64
    %875 = vmatprep.subr.mxu0 %v61
    %876 = vmatpush1.msra.mxu0 %v60
    %877 = vmatprep.subr.mxu0 %v57
    %878 = vmatpush1.msra.mxu0 %v56
    %879 = vmatprep.subr.mxu0 %v53
    %880 = vmatpush1.msra.mxu0 %v52
    %881 = vmatprep.subr.mxu0 %v49
    %882 = vmatpush1.msra.mxu0 %v48
    %883 = vmatprep.subr.mxu0 %v45
    %884 = vmatpush1.msra.mxu0 %v44
    %885 = vmatprep.subr.mxu0 0.0
    %886 = vmatpush2.msra.mxu0 0.0
    %887 = vmatprep.subr.mxu0 0.0
    %888 = vmatpush2.msra.mxu0 0.0
    %889 = vmatprep.subr.mxu0 0.0
    %890 = vmatpush2.msra.mxu0 0.0
    %891 = vmatprep.subr.mxu0 0.0
    %892 = vmatpush2.msra.mxu0 0.0
    %893 = vmatprep.subr.mxu0 0.0
    %894 = vmatpush2.msra.mxu0 0.0
    %895 = vmatprep.subr.mxu0 0.0
    %896 = vmatpush2.msra.mxu0 0.0
    %897 = vmatprep.subr.mxu0 0.0
    %898 = vmatpush2.msra.mxu0 0.0
    %899 = vmatprep.subr.mxu0 0.0
    %900 = vmatpush2.msra.mxu0 0.0
    %901 = vmatprep.subr.mxu0 0.0
    %902 = vmatpush2.msra.mxu0 0.0
    %903 = vmatprep.subr.mxu0 0.0
    %904 = vmatpush2.msra.mxu0 0.0
    %905 = vmatprep.subr.mxu0 0.0
    %906 = vmatpush2.msra.mxu0 0.0
    %907 = vmatprep.subr.mxu0 0.0
    %908 = vmatpush2.msra.mxu0 0.0
    %909 = vmatprep.subr.mxu0 0.0
    %910 = vmatpush2.msra.mxu0 0.0
    %911 = vmatprep.subr.mxu0 0.0
    %912 = vmatpush2.msra.mxu0 0.0
    %913 = vmatprep.subr.mxu0 0.0
    %914 = vmatpush2.msra.mxu0 0.0
    %915 = vmatprep.subr.mxu0 0.0
    %916 = vmatpush2.msra.mxu0 0.0
    %917 = vmatprep.mubr.f32.mxu0 0.0
    %918 = vmatmul.mubr.f32.gmra.mxu0 %v773
    %v919 = vpop.f32.mrf.mxu0
    %v920 = vadd.f32 0.0, %v919
    %v921 = vpop.f32.mrf.mxu0
    %v922 = vadd.f32 0.0, %v921
    %923 = vdwg.mxu0
    %v924 = vadd.f32 %v778, %v849
    %v925 = vadd.f32 %v779, %v851
    %v926 = vadd.f32 %v780, %v920
    %v927 = vadd.f32 %v781, %v922
    %v928 = vtanh.pop %v924
    %v929 = vtanh.pop %v925
    %v930 = vtanh.pop %v926
    %v931 = vmul.f32 %v928, 0.5
    %v932 = vmul.f32 %v929, 0.5
    %v933 = vmul.f32 %v930, 0.5
    %v934 = vadd.f32 %v931, 0.5
    %v935 = vadd.f32 %v932, 0.5
    %v936 = vadd.f32 %v933, 0.5
    %v937 = vtanh.pop %v927
    %v938 = vmul.f32 %v935, %v771
    %v939 = vmul.f32 %v934, %v937
    %v940 = vadd.f32 %v938, %v939
    %v941 = vtanh.pop %v940
    %v942 = vmul.f32 %v936, %v941
    %s943 = sadd.s32 %s34, 5
    %s944 = smul.u32 %s943, 4
    %s945 = smul.addr %s944, 8
    %s946 = scalar_lea.vmem %s0, %s945
    %v947 = vld [vmem:[%s946] sm:$0xff]
    %v948 = vld [vmem:[%s946 + $0x8] sm:$0xff]
    %v949 = vld [vmem:[%s946 + $0x10] sm:$0xff]
    %v950 = vld [vmem:[%s946 + $0x18] sm:$0xff]
    %951 = vmatprep.subr.mxu0 %v103
    %952 = vmatpush1.msra.mxu0 %v102
    %953 = vmatprep.subr.mxu0 %v99
    %954 = vmatpush1.msra.mxu0 %v98
    %955 = vmatprep.subr.mxu0 %v95
    %956 = vmatpush1.msra.mxu0 %v94
    %957 = vmatprep.subr.mxu0 %v91
    %958 = vmatpush1.msra.mxu0 %v90
    %959 = vmatprep.subr.mxu0 %v87
    %960 = vmatpush1.msra.mxu0 %v86
    %961 = vmatprep.subr.mxu0 %v83
    %962 = vmatpush1.msra.mxu0 %v82
    %963 = vmatprep.subr.mxu0 %v79
    %964 = vmatpush1.msra.mxu0 %v78
    %965 = vmatprep.subr.mxu0 %v75
    %966 = vmatpush1.msra.mxu0 %v74
    %967 = vmatprep.subr.mxu0 %v71
    %968 = vmatpush1.msra.mxu0 %v70
    %969 = vmatprep.subr.mxu0 %v67
    %970 = vmatpush1.msra.mxu0 %v66
    %971 = vmatprep.subr.mxu0 %v63
    %972 = vmatpush1.msra.mxu0 %v62
    %973 = vmatprep.subr.mxu0 %v59
    %974 = vmatpush1.msra.mxu0 %v58
    %975 = vmatprep.subr.mxu0 %v55
    %976 = vmatpush1.msra.mxu0 %v54
    %977 = vmatprep.subr.mxu0 %v51
    %978 = vmatpush1.msra.mxu0 %v50
    %979 = vmatprep.subr.mxu0 %v47
    %980 = vmatpush1.msra.mxu0 %v46
    %981 = vmatprep.subr.mxu0 %v43
    %982 = vmatpush1.msra.mxu0 %v42
    %983 = vmatprep.subr.mxu0 0.0
    %984 = vmatpush2.msra.mxu0 0.0
    %985 = vmatprep.subr.mxu0 0.0
    %986 = vmatpush2.msra.mxu0 0.0
    %987 = vmatprep.subr.mxu0 0.0
    %988 = vmatpush2.msra.mxu0 0.0
    %989 = vmatprep.subr.mxu0 0.0
    %990 = vmatpush2.msra.mxu0 0.0
    %991 = vmatprep.subr.mxu0 0.0
    %992 = vmatpush2.msra.mxu0 0.0
    %993 = vmatprep.subr.mxu0 0.0
    %994 = vmatpush2.msra.mxu0 0.0
    %995 = vmatprep.subr.mxu0 0.0
    %996 = vmatpush2.msra.mxu0 0.0
    %997 = vmatprep.subr.mxu0 0.0
    %998 = vmatpush2.msra.mxu0 0.0
    %999 = vmatprep.subr.mxu0 0.0
    %1000 = vmatpush2.msra.mxu0 0.0
    %1001 = vmatprep.subr.mxu0 0.0
    %1002 = vmatpush2.msra.mxu0 0.0
    %1003 = vmatprep.subr.mxu0 0.0
    %1004 = vmatpush2.msra.mxu0 0.0
    %1005 = vmatprep.subr.mxu0 0.0
    %1006 = vmatpush2.msra.mxu0 0.0
    %1007 = vmatprep.subr.mxu0 0.0
    %1008 = vmatpush2.msra.mxu0 0.0
    %1009 = vmatprep.subr.mxu0 0.0
    %1010 = vmatpush2.msra.mxu0 0.0
    %1011 = vmatprep.subr.mxu0 0.0
    %1012 = vmatpush2.msra.mxu0 0.0
    %1013 = vmatprep.subr.mxu0 0.0
    %1014 = vmatpush2.msra.mxu0 0.0
    %1015 = vmatprep.mubr.f32.mxu0 0.0
    %1016 = vmatmul.mubr.f32.gmra.mxu0 %v942
    %v1017 = vpop.f32.mrf.mxu0
    %v1018 = vadd.f32 0.0, %v1017
    %v1019 = vpop.f32.mrf.mxu0
    %v1020 = vadd.f32 0.0, %v1019
    %1021 = vdwg.mxu0
    %1022 = vmatprep.subr.mxu0 %v105
    %1023 = vmatpush1.msra.mxu0 %v104
    %1024 = vmatprep.subr.mxu0 %v101
    %1025 = vmatpush1.msra.mxu0 %v100
    %1026 = vmatprep.subr.mxu0 %v97
    %1027 = vmatpush1.msra.mxu0 %v96
    %1028 = vmatprep.subr.mxu0 %v93
    %1029 = vmatpush1.msra.mxu0 %v92
    %1030 = vmatprep.subr.mxu0 %v89
    %1031 = vmatpush1.msra.mxu0 %v88
    %1032 = vmatprep.subr.mxu0 %v85
    %1033 = vmatpush1.msra.mxu0 %v84
    %1034 = vmatprep.subr.mxu0 %v81
    %1035 = vmatpush1.msra.mxu0 %v80
    %1036 = vmatprep.subr.mxu0 %v77
    %1037 = vmatpush1.msra.mxu0 %v76
    %1038 = vmatprep.subr.mxu0 %v73
    %1039 = vmatpush1.msra.mxu0 %v72
    %1040 = vmatprep.subr.mxu0 %v69
    %1041 = vmatpush1.msra.mxu0 %v68
    %1042 = vmatprep.subr.mxu0 %v65
    %1043 = vmatpush1.msra.mxu0 %v64
    %1044 = vmatprep.subr.mxu0 %v61
    %1045 = vmatpush1.msra.mxu0 %v60
    %1046 = vmatprep.subr.mxu0 %v57
    %1047 = vmatpush1.msra.mxu0 %v56
    %1048 = vmatprep.subr.mxu0 %v53
    %1049 = vmatpush1.msra.mxu0 %v52
    %1050 = vmatprep.subr.mxu0 %v49
    %1051 = vmatpush1.msra.mxu0 %v48
    %1052 = vmatprep.subr.mxu0 %v45
    %1053 = vmatpush1.msra.mxu0 %v44
    %1054 = vmatprep.subr.mxu0 0.0
    %1055 = vmatpush2.msra.mxu0 0.0
    %1056 = vmatprep.subr.mxu0 0.0
    %1057 = vmatpush2.msra.mxu0 0.0
    %1058 = vmatprep.subr.mxu0 0.0
    %1059 = vmatpush2.msra.mxu0 0.0
    %1060 = vmatprep.subr.mxu0 0.0
    %1061 = vmatpush2.msra.mxu0 0.0
    %1062 = vmatprep.subr.mxu0 0.0
    %1063 = vmatpush2.msra.mxu0 0.0
    %1064 = vmatprep.subr.mxu0 0.0
    %1065 = vmatpush2.msra.mxu0 0.0
    %1066 = vmatprep.subr.mxu0 0.0
    %1067 = vmatpush2.msra.mxu0 0.0
    %1068 = vmatprep.subr.mxu0 0.0
    %1069 = vmatpush2.msra.mxu0 0.0
    %1070 = vmatprep.subr.mxu0 0.0
    %1071 = vmatpush2.msra.mxu0 0.0
    %1072 = vmatprep.subr.mxu0 0.0
    %1073 = vmatpush2.msra.mxu0 0.0
    %1074 = vmatprep.subr.mxu0 0.0
    %1075 = vmatpush2.msra.mxu0 0.0
    %1076 = vmatprep.subr.mxu0 0.0
    %1077 = vmatpush2.msra.mxu0 0.0
    %1078 = vmatprep.subr.mxu0 0.0
    %1079 = vmatpush2.msra.mxu0 0.0
    %1080 = vmatprep.subr.mxu0 0.0
    %1081 = vmatpush2.msra.mxu0 0.0
    %1082 = vmatprep.subr.mxu0 0.0
    %1083 = vmatpush2.msra.mxu0 0.0
    %1084 = vmatprep.subr.mxu0 0.0
    %1085 = vmatpush2.msra.mxu0 0.0
    %1086 = vmatprep.mubr.f32.mxu0 0.0
    %1087 = vmatmul.mubr.f32.gmra.mxu0 %v942
    %v1088 = vpop.f32.mrf.mxu0
    %v1089 = vadd.f32 0.0, %v1088
    %v1090 = vpop.f32.mrf.mxu0
    %v1091 = vadd.f32 0.0, %v1090
    %1092 = vdwg.mxu0
    %v1093 = vadd.f32 %v947, %v1018
    %v1094 = vadd.f32 %v948, %v1020
    %v1095 = vadd.f32 %v949, %v1089
    %v1096 = vadd.f32 %v950, %v1091
    %v1097 = vtanh.pop %v1093
    %v1098 = vtanh.pop %v1094
    %v1099 = vtanh.pop %v1095
    %v1100 = vmul.f32 %v1097, 0.5
    %v1101 = vmul.f32 %v1098, 0.5
    %v1102 = vmul.f32 %v1099, 0.5
    %v1103 = vadd.f32 %v1100, 0.5
    %v1104 = vadd.f32 %v1101, 0.5
    %v1105 = vadd.f32 %v1102, 0.5
    %v1106 = vtanh.pop %v1096
    %v1107 = vmul.f32 %v1104, %v940
    %v1108 = vmul.f32 %v1103, %v1106
    %v1109 = vadd.f32 %v1107, %v1108
    %v1110 = vtanh.pop %v1109
    %v1111 = vmul.f32 %v1105, %v1110
    %s1112 = sadd.s32 %s34, 6
    %s1113 = smul.u32 %s1112, 4
    %s1114 = smul.addr %s1113, 8
    %s1115 = scalar_lea.vmem %s0, %s1114
    %v1116 = vld [vmem:[%s1115] sm:$0xff]
    %v1117 = vld [vmem:[%s1115 + $0x8] sm:$0xff]
    %v1118 = vld [vmem:[%s1115 + $0x10] sm:$0xff]
    %v1119 = vld [vmem:[%s1115 + $0x18] sm:$0xff]
    %1120 = vmatprep.subr.mxu0 %v103
    %1121 = vmatpush1.msra.mxu0 %v102
    %1122 = vmatprep.subr.mxu0 %v99
    %1123 = vmatpush1.msra.mxu0 %v98
    %1124 = vmatprep.subr.mxu0 %v95
    %1125 = vmatpush1.msra.mxu0 %v94
    %1126 = vmatprep.subr.mxu0 %v91
    %1127 = vmatpush1.msra.mxu0 %v90
    %1128 = vmatprep.subr.mxu0 %v87
    %1129 = vmatpush1.msra.mxu0 %v86
    %1130 = vmatprep.subr.mxu0 %v83
    %1131 = vmatpush1.msra.mxu0 %v82
    %1132 = vmatprep.subr.mxu0 %v79
    %1133 = vmatpush1.msra.mxu0 %v78
    %1134 = vmatprep.subr.mxu0 %v75
    %1135 = vmatpush1.msra.mxu0 %v74
    %1136 = vmatprep.subr.mxu0 %v71
    %1137 = vmatpush1.msra.mxu0 %v70
    %1138 = vmatprep.subr.mxu0 %v67
    %1139 = vmatpush1.msra.mxu0 %v66
    %1140 = vmatprep.subr.mxu0 %v63
    %1141 = vmatpush1.msra.mxu0 %v62
    %1142 = vmatprep.subr.mxu0 %v59
    %1143 = vmatpush1.msra.mxu0 %v58
    %1144 = vmatprep.subr.mxu0 %v55
    %1145 = vmatpush1.msra.mxu0 %v54
    %1146 = vmatprep.subr.mxu0 %v51
    %1147 = vmatpush1.msra.mxu0 %v50
    %1148 = vmatprep.subr.mxu0 %v47
    %1149 = vmatpush1.msra.mxu0 %v46
    %1150 = vmatprep.subr.mxu0 %v43
    %1151 = vmatpush1.msra.mxu0 %v42
    %1152 = vmatprep.subr.mxu0 0.0
    %1153 = vmatpush2.msra.mxu0 0.0
    %1154 = vmatprep.subr.mxu0 0.0
    %1155 = vmatpush2.msra.mxu0 0.0
    %1156 = vmatprep.subr.mxu0 0.0
    %1157 = vmatpush2.msra.mxu0 0.0
    %1158 = vmatprep.subr.mxu0 0.0
    %1159 = vmatpush2.msra.mxu0 0.0
    %1160 = vmatprep.subr.mxu0 0.0
    %1161 = vmatpush2.msra.mxu0 0.0
    %1162 = vmatprep.subr.mxu0 0.0
    %1163 = vmatpush2.msra.mxu0 0.0
    %1164 = vmatprep.subr.mxu0 0.0
    %1165 = vmatpush2.msra.mxu0 0.0
    %1166 = vmatprep.subr.mxu0 0.0
    %1167 = vmatpush2.msra.mxu0 0.0
    %1168 = vmatprep.subr.mxu0 0.0
    %1169 = vmatpush2.msra.mxu0 0.0
    %1170 = vmatprep.subr.mxu0 0.0
    %1171 = vmatpush2.msra.mxu0 0.0
    %1172 = vmatprep.subr.mxu0 0.0
    %1173 = vmatpush2.msra.mxu0 0.0
    %1174 = vmatprep.subr.mxu0 0.0
    %1175 = vmatpush2.msra.mxu0 0.0
    %1176 = vmatprep.subr.mxu0 0.0
    %1177 = vmatpush2.msra.mxu0 0.0
    %1178 = vmatprep.subr.mxu0 0.0
    %1179 = vmatpush2.msra.mxu0 0.0
    %1180 = vmatprep.subr.mxu0 0.0
    %1181 = vmatpush2.msra.mxu0 0.0
    %1182 = vmatprep.subr.mxu0 0.0
    %1183 = vmatpush2.msra.mxu0 0.0
    %1184 = vmatprep.mubr.f32.mxu0 0.0
    %1185 = vmatmul.mubr.f32.gmra.mxu0 %v1111
    %v1186 = vpop.f32.mrf.mxu0
    %v1187 = vadd.f32 0.0, %v1186
    %v1188 = vpop.f32.mrf.mxu0
    %v1189 = vadd.f32 0.0, %v1188
    %1190 = vdwg.mxu0
    %1191 = vmatprep.subr.mxu0 %v105
    %1192 = vmatpush1.msra.mxu0 %v104
    %1193 = vmatprep.subr.mxu0 %v101
    %1194 = vmatpush1.msra.mxu0 %v100
    %1195 = vmatprep.subr.mxu0 %v97
    %1196 = vmatpush1.msra.mxu0 %v96
    %1197 = vmatprep.subr.mxu0 %v93
    %1198 = vmatpush1.msra.mxu0 %v92
    %1199 = vmatprep.subr.mxu0 %v89
    %1200 = vmatpush1.msra.mxu0 %v88
    %1201 = vmatprep.subr.mxu0 %v85
    %1202 = vmatpush1.msra.mxu0 %v84
    %1203 = vmatprep.subr.mxu0 %v81
    %1204 = vmatpush1.msra.mxu0 %v80
    %1205 = vmatprep.subr.mxu0 %v77
    %1206 = vmatpush1.msra.mxu0 %v76
    %1207 = vmatprep.subr.mxu0 %v73
    %1208 = vmatpush1.msra.mxu0 %v72
    %1209 = vmatprep.subr.mxu0 %v69
    %1210 = vmatpush1.msra.mxu0 %v68
    %1211 = vmatprep.subr.mxu0 %v65
    %1212 = vmatpush1.msra.mxu0 %v64
    %1213 = vmatprep.subr.mxu0 %v61
    %1214 = vmatpush1.msra.mxu0 %v60
    %1215 = vmatprep.subr.mxu0 %v57
    %1216 = vmatpush1.msra.mxu0 %v56
    %1217 = vmatprep.subr.mxu0 %v53
    %1218 = vmatpush1.msra.mxu0 %v52
    %1219 = vmatprep.subr.mxu0 %v49
    %1220 = vmatpush1.msra.mxu0 %v48
    %1221 = vmatprep.subr.mxu0 %v45
    %1222 = vmatpush1.msra.mxu0 %v44
    %1223 = vmatprep.subr.mxu0 0.0
    %1224 = vmatpush2.msra.mxu0 0.0
    %1225 = vmatprep.subr.mxu0 0.0
    %1226 = vmatpush2.msra.mxu0 0.0
    %1227 = vmatprep.subr.mxu0 0.0
    %1228 = vmatpush2.msra.mxu0 0.0
    %1229 = vmatprep.subr.mxu0 0.0
    %1230 = vmatpush2.msra.mxu0 0.0
    %1231 = vmatprep.subr.mxu0 0.0
    %1232 = vmatpush2.msra.mxu0 0.0
    %1233 = vmatprep.subr.mxu0 0.0
    %1234 = vmatpush2.msra.mxu0 0.0
    %1235 = vmatprep.subr.mxu0 0.0
    %1236 = vmatpush2.msra.mxu0 0.0
    %1237 = vmatprep.subr.mxu0 0.0
    %1238 = vmatpush2.msra.mxu0 0.0
    %1239 = vmatprep.subr.mxu0 0.0
    %1240 = vmatpush2.msra.mxu0 0.0
    %1241 = vmatprep.subr.mxu0 0.0
    %1242 = vmatpush2.msra.mxu0 0.0
    %1243 = vmatprep.subr.mxu0 0.0
    %1244 = vmatpush2.msra.mxu0 0.0
    %1245 = vmatprep.subr.mxu0 0.0
    %1246 = vmatpush2.msra.mxu0 0.0
    %1247 = vmatprep.subr.mxu0 0.0
    %1248 = vmatpush2.msra.mxu0 0.0
    %1249 = vmatprep.subr.mxu0 0.0
    %1250 = vmatpush2.msra.mxu0 0.0
    %1251 = vmatprep.subr.mxu0 0.0
    %1252 = vmatpush2.msra.mxu0 0.0
    %1253 = vmatprep.subr.mxu0 0.0
    %1254 = vmatpush2.msra.mxu0 0.0
    %1255 = vmatprep.mubr.f32.mxu0 0.0
    %1256 = vmatmul.mubr.f32.gmra.mxu0 %v1111
    %v1257 = vpop.f32.mrf.mxu0
    %v1258 = vadd.f32 0.0, %v1257
    %v1259 = vpop.f32.mrf.mxu0
    %v1260 = vadd.f32 0.0, %v1259
    %1261 = vdwg.mxu0
    %v1262 = vadd.f32 %v1116, %v1187
    %v1263 = vadd.f32 %v1117, %v1189
    %v1264 = vadd.f32 %v1118, %v1258
    %v1265 = vadd.f32 %v1119, %v1260
    %v1266 = vtanh.pop %v1262
    %v1267 = vtanh.pop %v1263
    %v1268 = vtanh.pop %v1264
    %v1269 = vmul.f32 %v1266, 0.5
    %v1270 = vmul.f32 %v1267, 0.5
    %v1271 = vmul.f32 %v1268, 0.5
    %v1272 = vadd.f32 %v1269, 0.5
    %v1273 = vadd.f32 %v1270, 0.5
    %v1274 = vadd.f32 %v1271, 0.5
    %v1275 = vtanh.pop %v1265
    %v1276 = vmul.f32 %v1273, %v1109
    %v1277 = vmul.f32 %v1272, %v1275
    %v1278 = vadd.f32 %v1276, %v1277
    %v1279 = vtanh.pop %v1278
    %v1280 = vmul.f32 %v1274, %v1279
    %s1281 = sadd.s32 %s34, 7
    %s1282 = smul.u32 %s1281, 4
    %s1283 = smul.addr %s1282, 8
    %s1284 = scalar_lea.vmem %s0, %s1283
    %v1285 = vld [vmem:[%s1284] sm:$0xff]
    %v1286 = vld [vmem:[%s1284 + $0x8] sm:$0xff]
    %v1287 = vld [vmem:[%s1284 + $0x10] sm:$0xff]
    %v1288 = vld [vmem:[%s1284 + $0x18] sm:$0xff]
    %1289 = vmatprep.subr.mxu0 %v103
    %1290 = vmatpush1.msra.mxu0 %v102
    %1291 = vmatprep.subr.mxu0 %v99
    %1292 = vmatpush1.msra.mxu0 %v98
    %1293 = vmatprep.subr.mxu0 %v95
    %1294 = vmatpush1.msra.mxu0 %v94
    %1295 = vmatprep.subr.mxu0 %v91
    %1296 = vmatpush1.msra.mxu0 %v90
    %1297 = vmatprep.subr.mxu0 %v87
    %1298 = vmatpush1.msra.mxu0 %v86
    %1299 = vmatprep.subr.mxu0 %v83
    %1300 = vmatpush1.msra.mxu0 %v82
    %1301 = vmatprep.subr.mxu0 %v79
    %1302 = vmatpush1.msra.mxu0 %v78
    %1303 = vmatprep.subr.mxu0 %v75
    %1304 = vmatpush1.msra.mxu0 %v74
    %1305 = vmatprep.subr.mxu0 %v71
    %1306 = vmatpush1.msra.mxu0 %v70
    %1307 = vmatprep.subr.mxu0 %v67
    %1308 = vmatpush1.msra.mxu0 %v66
    %1309 = vmatprep.subr.mxu0 %v63
    %1310 = vmatpush1.msra.mxu0 %v62
    %1311 = vmatprep.subr.mxu0 %v59
    %1312 = vmatpush1.msra.mxu0 %v58
    %1313 = vmatprep.subr.mxu0 %v55
    %1314 = vmatpush1.msra.mxu0 %v54
    %1315 = vmatprep.subr.mxu0 %v51
    %1316 = vmatpush1.msra.mxu0 %v50
    %1317 = vmatprep.subr.mxu0 %v47
    %1318 = vmatpush1.msra.mxu0 %v46
    %1319 = vmatprep.subr.mxu0 %v43
    %1320 = vmatpush1.msra.mxu0 %v42
    %1321 = vmatprep.subr.mxu0 0.0
    %1322 = vmatpush2.msra.mxu0 0.0
    %1323 = vmatprep.subr.mxu0 0.0
    %1324 = vmatpush2.msra.mxu0 0.0
    %1325 = vmatprep.subr.mxu0 0.0
    %1326 = vmatpush2.msra.mxu0 0.0
    %1327 = vmatprep.subr.mxu0 0.0
    %1328 = vmatpush2.msra.mxu0 0.0
    %1329 = vmatprep.subr.mxu0 0.0
    %1330 = vmatpush2.msra.mxu0 0.0
    %1331 = vmatprep.subr.mxu0 0.0
    %1332 = vmatpush2.msra.mxu0 0.0
    %1333 = vmatprep.subr.mxu0 0.0
    %1334 = vmatpush2.msra.mxu0 0.0
    %1335 = vmatprep.subr.mxu0 0.0
    %1336 = vmatpush2.msra.mxu0 0.0
    %1337 = vmatprep.subr.mxu0 0.0
    %1338 = vmatpush2.msra.mxu0 0.0
    %1339 = vmatprep.subr.mxu0 0.0
    %1340 = vmatpush2.msra.mxu0 0.0
    %1341 = vmatprep.subr.mxu0 0.0
    %1342 = vmatpush2.msra.mxu0 0.0
    %1343 = vmatprep.subr.mxu0 0.0
    %1344 = vmatpush2.msra.mxu0 0.0
    %1345 = vmatprep.subr.mxu0 0.0
    %1346 = vmatpush2.msra.mxu0 0.0
    %1347 = vmatprep.subr.mxu0 0.0
    %1348 = vmatpush2.msra.mxu0 0.0
    %1349 = vmatprep.subr.mxu0 0.0
    %1350 = vmatpush2.msra.mxu0 0.0
    %1351 = vmatprep.subr.mxu0 0.0
    %1352 = vmatpush2.msra.mxu0 0.0
    %1353 = vmatprep.mubr.f32.mxu0 0.0
    %1354 = vmatmul.mubr.f32.gmra.mxu0 %v1280
    %v1355 = vpop.f32.mrf.mxu0
    %v1356 = vadd.f32 0.0, %v1355
    %v1357 = vpop.f32.mrf.mxu0
    %v1358 = vadd.f32 0.0, %v1357
    %1359 = vdwg.mxu0
    %1360 = vmatprep.subr.mxu0 %v105
    %1361 = vmatpush1.msra.mxu0 %v104
    %1362 = vmatprep.subr.mxu0 %v101
    %1363 = vmatpush1.msra.mxu0 %v100
    %1364 = vmatprep.subr.mxu0 %v97
    %1365 = vmatpush1.msra.mxu0 %v96
    %1366 = vmatprep.subr.mxu0 %v93
    %1367 = vmatpush1.msra.mxu0 %v92
    %1368 = vmatprep.subr.mxu0 %v89
    %1369 = vmatpush1.msra.mxu0 %v88
    %1370 = vmatprep.subr.mxu0 %v85
    %1371 = vmatpush1.msra.mxu0 %v84
    %1372 = vmatprep.subr.mxu0 %v81
    %1373 = vmatpush1.msra.mxu0 %v80
    %1374 = vmatprep.subr.mxu0 %v77
    %1375 = vmatpush1.msra.mxu0 %v76
    %1376 = vmatprep.subr.mxu0 %v73
    %1377 = vmatpush1.msra.mxu0 %v72
    %1378 = vmatprep.subr.mxu0 %v69
    %1379 = vmatpush1.msra.mxu0 %v68
    %1380 = vmatprep.subr.mxu0 %v65
    %1381 = vmatpush1.msra.mxu0 %v64
    %1382 = vmatprep.subr.mxu0 %v61
    %1383 = vmatpush1.msra.mxu0 %v60
    %1384 = vmatprep.subr.mxu0 %v57
    %1385 = vmatpush1.msra.mxu0 %v56
    %1386 = vmatprep.subr.mxu0 %v53
    %1387 = vmatpush1.msra.mxu0 %v52
    %1388 = vmatprep.subr.mxu0 %v49
    %1389 = vmatpush1.msra.mxu0 %v48
    %1390 = vmatprep.subr.mxu0 %v45
    %1391 = vmatpush1.msra.mxu0 %v44
    %1392 = vmatprep.subr.mxu0 0.0
    %1393 = vmatpush2.msra.mxu0 0.0
    %1394 = vmatprep.subr.mxu0 0.0
    %1395 = vmatpush2.msra.mxu0 0.0
    %1396 = vmatprep.subr.mxu0 0.0
    %1397 = vmatpush2.msra.mxu0 0.0
    %1398 = vmatprep.subr.mxu0 0.0
    %1399 = vmatpush2.msra.mxu0 0.0
    %1400 = vmatprep.subr.mxu0 0.0
    %1401 = vmatpush2.msra.mxu0 0.0
    %1402 = vmatprep.subr.mxu0 0.0
    %1403 = vmatpush2.msra.mxu0 0.0
    %1404 = vmatprep.subr.mxu0 0.0
    %1405 = vmatpush2.msra.mxu0 0.0
    %1406 = vmatprep.subr.mxu0 0.0
    %1407 = vmatpush2.msra.mxu0 0.0
    %1408 = vmatprep.subr.mxu0 0.0
    %1409 = vmatpush2.msra.mxu0 0.0
    %1410 = vmatprep.subr.mxu0 0.0
    %1411 = vmatpush2.msra.mxu0 0.0
    %1412 = vmatprep.subr.mxu0 0.0
    %1413 = vmatpush2.msra.mxu0 0.0
    %1414 = vmatprep.subr.mxu0 0.0
    %1415 = vmatpush2.msra.mxu0 0.0
    %1416 = vmatprep.subr.mxu0 0.0
    %1417 = vmatpush2.msra.mxu0 0.0
    %1418 = vmatprep.subr.mxu0 0.0
    %1419 = vmatpush2.msra.mxu0 0.0
    %1420 = vmatprep.subr.mxu0 0.0
    %1421 = vmatpush2.msra.mxu0 0.0
    %1422 = vmatprep.subr.mxu0 0.0
    %1423 = vmatpush2.msra.mxu0 0.0
    %1424 = vmatprep.mubr.f32.mxu0 0.0
    %1425 = vmatmul.mubr.f32.gmra.mxu0 %v1280
    %v1426 = vpop.f32.mrf.mxu0
    %v1427 = vadd.f32 0.0, %v1426
    %v1428 = vpop.f32.mrf.mxu0
    %v1429 = vadd.f32 0.0, %v1428
    %1430 = vdwg.mxu0
    %v1431 = vadd.f32 %v1285, %v1356
    %v1432 = vadd.f32 %v1286, %v1358
    %v1433 = vadd.f32 %v1287, %v1427
    %v1434 = vadd.f32 %v1288, %v1429
    %v1435 = vtanh.pop %v1431
    %v1436 = vtanh.pop %v1432
    %v1437 = vtanh.pop %v1433
    %v1438 = vmul.f32 %v1435, 0.5
    %v1439 = vmul.f32 %v1436, 0.5
    %v1440 = vmul.f32 %v1437, 0.5
    %v1441 = vadd.f32 %v1438, 0.5
    %v1442 = vadd.f32 %v1439, 0.5
    %v1443 = vadd.f32 %v1440, 0.5
    %v1444 = vtanh.pop %v1434
    %v1445 = vmul.f32 %v1442, %v1278
    %v1446 = vmul.f32 %v1441, %v1444
    %v1447 = vadd.f32 %v1445, %v1446
    %v1448 = vtanh.pop %v1447
    %v1449 = vmul.f32 %v1443, %v1448
  $region34: #{_lambda_.1} parent=0 // loop_footer
    %s31 = sadd.s32 1, %s27
  $region35: #{_lambda_.1} parent=0 // loop_footer_branch
    %26 = sbr.rel target = $region31
  $region36: #{_lambda_.1} parent=0 // loop_exit
    _
  %v1450 = vld [vmem:[%s2] sm:$0xff]
  %v1451 = vadd.f32 %v32, %v1450
  %v1452 = vld [vmem:[%s3] sm:$0xff]
  %v1453 = vld [vmem:[%s3 + $0x8] sm:$0xff]
  %v1454 = vld [vmem:[%s3 + $0x10] sm:$0xff]
  %v1455 = vld [vmem:[%s3 + $0x18] sm:$0xff]
  %v1456 = vld [vmem:[%s3 + $0x20] sm:$0xff]
  %v1457 = vld [vmem:[%s3 + $0x28] sm:$0xff]
  %v1458 = vld [vmem:[%s3 + $0x30] sm:$0xff]
  %v1459 = vld [vmem:[%s3 + $0x38] sm:$0xff]
  %v1460 = vld [vmem:[%s3 + $0x40] sm:$0xff]
  %v1461 = vld [vmem:[%s3 + $0x48] sm:$0xff]
  %v1462 = vld [vmem:[%s3 + $0x50] sm:$0xff]
  %v1463 = vld [vmem:[%s3 + $0x58] sm:$0xff]
  %v1464 = vld [vmem:[%s3 + $0x60] sm:$0xff]
  %v1465 = vld [vmem:[%s3 + $0x68] sm:$0xff]
  %v1466 = vld [vmem:[%s3 + $0x70] sm:$0xff]
  %v1467 = vld [vmem:[%s3 + $0x78] sm:$0xff]
  %v1468 = vld [vmem:[%s4] sm:$0x1]
  %v1470 = vlaneseq
  %v1471 = vshrl.u32 %v1470, 7
  %v1472 = vsub.s32 0, %v1471
  %v1473 = vrot.slane %v1468, %v1472
  %1475 = vmatprep.subr.mxu0 0.0
  %1476 = vmatpush1.msra.mxu0 %v1467
  %1477 = vmatprep.subr.mxu0 0.0
  %1478 = vmatpush1.msra.mxu0 %v1466
  %1479 = vmatprep.subr.mxu0 0.0
  %1480 = vmatpush1.msra.mxu0 %v1465
  %1481 = vmatprep.subr.mxu0 0.0
  %1482 = vmatpush1.msra.mxu0 %v1464
  %1483 = vmatprep.subr.mxu0 0.0
  %1484 = vmatpush1.msra.mxu0 %v1463
  %1485 = vmatprep.subr.mxu0 0.0
  %1486 = vmatpush1.msra.mxu0 %v1462
  %1487 = vmatprep.subr.mxu0 0.0
  %1488 = vmatpush1.msra.mxu0 %v1461
  %1489 = vmatprep.subr.mxu0 0.0
  %1490 = vmatpush1.msra.mxu0 %v1460
  %1491 = vmatprep.subr.mxu0 0.0
  %1492 = vmatpush1.msra.mxu0 %v1459
  %1493 = vmatprep.subr.mxu0 0.0
  %1494 = vmatpush1.msra.mxu0 %v1458
  %1495 = vmatprep.subr.mxu0 0.0
  %1496 = vmatpush1.msra.mxu0 %v1457
  %1497 = vmatprep.subr.mxu0 0.0
  %1498 = vmatpush1.msra.mxu0 %v1456
  %1499 = vmatprep.subr.mxu0 0.0
  %1500 = vmatpush1.msra.mxu0 %v1455
  %1501 = vmatprep.subr.mxu0 0.0
  %1502 = vmatpush1.msra.mxu0 %v1454
  %1503 = vmatprep.subr.mxu0 0.0
  %1504 = vmatpush1.msra.mxu0 %v1453
  %1505 = vmatprep.subr.mxu0 0.0
  %1506 = vmatpush1.msra.mxu0 %v1452
  %1507 = vmatprep.subr.mxu0 0.0
  %1508 = vmatpush2.msra.mxu0 0.0
  %1509 = vmatprep.subr.mxu0 0.0
  %1510 = vmatpush2.msra.mxu0 0.0
  %1511 = vmatprep.subr.mxu0 0.0
  %1512 = vmatpush2.msra.mxu0 0.0
  %1513 = vmatprep.subr.mxu0 0.0
  %1514 = vmatpush2.msra.mxu0 0.0
  %1515 = vmatprep.subr.mxu0 0.0
  %1516 = vmatpush2.msra.mxu0 0.0
  %1517 = vmatprep.subr.mxu0 0.0
  %1518 = vmatpush2.msra.mxu0 0.0
  %1519 = vmatprep.subr.mxu0 0.0
  %1520 = vmatpush2.msra.mxu0 0.0
  %1521 = vmatprep.subr.mxu0 0.0
  %1522 = vmatpush2.msra.mxu0 0.0
  %1523 = vmatprep.subr.mxu0 0.0
  %1524 = vmatpush2.msra.mxu0 0.0
  %1525 = vmatprep.subr.mxu0 0.0
  %1526 = vmatpush2.msra.mxu0 0.0
  %1527 = vmatprep.subr.mxu0 0.0
  %1528 = vmatpush2.msra.mxu0 0.0
  %1529 = vmatprep.subr.mxu0 0.0
  %1530 = vmatpush2.msra.mxu0 0.0
  %1531 = vmatprep.subr.mxu0 0.0
  %1532 = vmatpush2.msra.mxu0 0.0
  %1533 = vmatprep.subr.mxu0 0.0
  %1534 = vmatpush2.msra.mxu0 0.0
  %1535 = vmatprep.subr.mxu0 0.0
  %1536 = vmatpush2.msra.mxu0 0.0
  %1537 = vmatprep.subr.mxu0 0.0
  %1538 = vmatpush2.msra.mxu0 0.0
  %1539 = vmatprep.mubr.f32.mxu0 0.0
  %1540 = vmatmul.mubr.f32.gmra.mxu0 %v1451
  %v1541 = vpop.f32.mrf.mxu0
  %v1542 = vadd.f32 %v1473, %v1541
  %v1543 = vpop.f32.mrf.mxu0
  %1544 = vdwg.mxu0
  %v1545 = vmax.f32 %v1542, 0.0
  %v1546 = vld [vmem:[%s5] sm:$0xff]
  %v1547 = vld [vmem:[%s5 + $0x8] sm:$0xff]
  %v1548 = vld [vmem:[%s5 + $0x10] sm:$0xff]
  %v1549 = vld [vmem:[%s5 + $0x18] sm:$0xff]
  %v1550 = vld [vmem:[%s5 + $0x20] sm:$0xff]
  %v1551 = vld [vmem:[%s5 + $0x28] sm:$0xff]
  %v1552 = vld [vmem:[%s5 + $0x30] sm:$0x3]
  %v1553 = vld [vmem:[%s6] sm:$0x1]
  %v1555 = vlaneseq
  %v1556 = vshrl.u32 %v1555, 7
  %v1557 = vsub.s32 0, %v1556
  %v1558 = vrot.slane %v1553, %v1557
  %vm1560 = vcmask 408576
  %v1562 = vsel %vm1560, %v1545, 0
  %vm1564 = vcmask 1041408
  %v1566 = vsel %vm1564, %v1552, 0
  %1568 = vmatprep.subr.mxu0 0.0
  %1569 = vmatpush1.msra.mxu0 0.0
  %1570 = vmatprep.subr.mxu0 0.0
  %1571 = vmatpush1.msra.mxu0 0.0
  %1572 = vmatprep.subr.mxu0 0.0
  %1573 = vmatpush1.msra.mxu0 0.0
  %1574 = vmatprep.subr.mxu0 0.0
  %1575 = vmatpush1.msra.mxu0 0.0
  %1576 = vmatprep.subr.mxu0 0.0
  %1577 = vmatpush1.msra.mxu0 0.0
  %1578 = vmatprep.subr.mxu0 0.0
  %1579 = vmatpush1.msra.mxu0 0.0
  %1580 = vmatprep.subr.mxu0 0.0
  %1581 = vmatpush1.msra.mxu0 0.0
  %1582 = vmatprep.subr.mxu0 0.0
  %1583 = vmatpush1.msra.mxu0 0.0
  %1584 = vmatprep.subr.mxu0 0.0
  %1585 = vmatpush1.msra.mxu0 0.0
  %1586 = vmatprep.subr.mxu0 0.0
  %1587 = vmatpush1.msra.mxu0 %v1566
  %1588 = vmatprep.subr.mxu0 0.0
  %1589 = vmatpush1.msra.mxu0 %v1551
  %1590 = vmatprep.subr.mxu0 0.0
  %1591 = vmatpush1.msra.mxu0 %v1550
  %1592 = vmatprep.subr.mxu0 0.0
  %1593 = vmatpush1.msra.mxu0 %v1549
  %1594 = vmatprep.subr.mxu0 0.0
  %1595 = vmatpush1.msra.mxu0 %v1548
  %1596 = vmatprep.subr.mxu0 0.0
  %1597 = vmatpush1.msra.mxu0 %v1547
  %1598 = vmatprep.subr.mxu0 0.0
  %1599 = vmatpush1.msra.mxu0 %v1546
  %1600 = vmatprep.subr.mxu0 0.0
  %1601 = vmatpush2.msra.mxu0 0.0
  %1602 = vmatprep.subr.mxu0 0.0
  %1603 = vmatpush2.msra.mxu0 0.0
  %1604 = vmatprep.subr.mxu0 0.0
  %1605 = vmatpush2.msra.mxu0 0.0
  %1606 = vmatprep.subr.mxu0 0.0
  %1607 = vmatpush2.msra.mxu0 0.0
  %1608 = vmatprep.subr.mxu0 0.0
  %1609 = vmatpush2.msra.mxu0 0.0
  %1610 = vmatprep.subr.mxu0 0.0
  %1611 = vmatpush2.msra.mxu0 0.0
  %1612 = vmatprep.subr.mxu0 0.0
  %1613 = vmatpush2.msra.mxu0 0.0
  %1614 = vmatprep.subr.mxu0 0.0
  %1615 = vmatpush2.msra.mxu0 0.0
  %1616 = vmatprep.subr.mxu0 0.0
  %1617 = vmatpush2.msra.mxu0 0.0
  %1618 = vmatprep.subr.mxu0 0.0
  %1619 = vmatpush2.msra.mxu0 0.0
  %1620 = vmatprep.subr.mxu0 0.0
  %1621 = vmatpush2.msra.mxu0 0.0
  %1622 = vmatprep.subr.mxu0 0.0
  %1623 = vmatpush2.msra.mxu0 0.0
  %1624 = vmatprep.subr.mxu0 0.0
  %1625 = vmatpush2.msra.mxu0 0.0
  %1626 = vmatprep.subr.mxu0 0.0
  %1627 = vmatpush2.msra.mxu0 0.0
  %1628 = vmatprep.subr.mxu0 0.0
  %1629 = vmatpush2.msra.mxu0 0.0
  %1630 = vmatprep.subr.mxu0 0.0
  %1631 = vmatpush2.msra.mxu0 0.0
  %1632 = vmatprep.mubr.f32.mxu0 0.0
  %1633 = vmatmul.mubr.f32.gmra.mxu0 %v1562
  %v1634 = vpop.f32.mrf.mxu0
  %v1635 = vadd.f32 %v1558, %v1634
  %v1636 = vpop.f32.mrf.mxu0
  %1637 = vdwg.mxu0
  %vm1638 = vcmask 72704
  %1639 = vst.msk [vmem:[%s7] sm:$0xff] %vm1638, %v1635
  // Predicated region
  $region37: #{_lambda_.1} parent=0 // pred_check
    _
  $region38: #{_lambda_.1} parent=0 // pred_check_branch
    %1641 = sbr.rel (0) target = $region40
  $region39: #{_lambda_.1} parent=0 // pred_region
    _
  $region40: #{_lambda_.1} parent=0 // pred_fallthru
    _
  // Predicated region
  $region41: #{_lambda_.1} parent=0 // pred_check
    _
  $region42: #{_lambda_.1} parent=0 // pred_check_branch
    %1643 = sbr.rel (0) target = $region44
  $region43: #{_lambda_.1} parent=0 // pred_region
    _
  $region44: #{_lambda_.1} parent=0 // pred_fallthru
    _

</llo_original>
